<compile_context>
chip_gen: v6e
topology: v6e:2x2x1
jax: 0.10.0
libtpu: 0.0.40
codegen_flags: <defaults>
</compile_context>

<pallas_src>
import functools
import math

import jax
import jax.numpy as jnp
from jax import lax
from jax.experimental import pallas as pl
from jax.experimental.pallas import tpu as pltpu


# ---------------------------------------------------------------------------
# Numerics helpers
# ---------------------------------------------------------------------------
def _softmax_kernel(x, axis=-1):
    """In-kernel softmax: exp on the EUP, denominator reciprocal via approx vrcp."""
    m = jnp.max(x, axis=axis, keepdims=True)
    e = jnp.exp(x - m)
    return e * pl.reciprocal(jnp.sum(e, axis=axis, keepdims=True), approx=True)


def _softmax_ref(x, axis=-1):
    m = jnp.max(x, axis=axis, keepdims=True)
    e = jnp.exp(x - m)
    return e / jnp.sum(e, axis=axis, keepdims=True)


def _layernorm(x, w, b, eps=1e-5):
    mu = jnp.mean(x, axis=-1, keepdims=True)
    var = jnp.mean(jnp.square(x - mu), axis=-1, keepdims=True)
    return (x - mu) * lax.rsqrt(var + eps) * w + b


# ---------------------------------------------------------------------------
# Fused kernel: one batch *block* (Bt elements) per grid step.  Matmul weights
# arrive in bf16 and pre-transposed so the kernel computes `x @ W` on the MXU.
# ---------------------------------------------------------------------------
def mh_attention_kernel(x_ref, wt_ref, ln1w_ref, ln1b_ref,
                        wq_ref, bq_ref, wk_ref, bk_ref, wv_ref, bv_ref,
                        wo_ref, bo_ref, ln2w_ref, ln2b_ref,
                        wfc_ref, bfc_ref, wpr_ref, bpr_ref,
                        wq2_ref, wk2_ref, hmask_ref,
                        xout_ref, tout_ref, *, num_heads):
    bf16 = jnp.bfloat16
    f32 = jnp.float32

    x_bf = x_ref[...]                            # (Bt, L, D) bf16 (x streamed in bf16)
    Bt, L, D = x_bf.shape
    H = num_heads
    hd = D // H
    T = wt_ref.shape[1]
    scale = 1.0 / math.sqrt(hd)

    # Flat 2-D view: every weight-shared matmul becomes one fat (Bt*rows, D) MXU push.
    x2_bf = x_bf.reshape(Bt * L, D)

    # ---- Visual_Tokenizer (static) ----
    scores = jnp.dot(x2_bf, wt_ref[...], preferred_element_type=f32)       # (Bt*L, T)
    p_tok = _softmax_kernel(scores.reshape(Bt, L, T), axis=1)              # softmax over L
    # t_in[b] = p_tok[b]^T @ x[b]: contract L of both operands (transpose-free).
    t_in = lax.dot_general(p_tok.astype(bf16), x_bf,
                           dimension_numbers=(((1,), (1,)), ((0,), (0,))),
                           preferred_element_type=f32)                     # (Bt, T, D)

    # ---- ResidualAttentionBlock: pre-LN multi-head self-attention ----
    h1 = _layernorm(t_in, ln1w_ref[...], ln1b_ref[...])                    # f32
    h1_bf = h1.astype(bf16).reshape(Bt * T, D)
    q = (jnp.dot(h1_bf, wq_ref[...], preferred_element_type=f32)
         + bq_ref[...]).reshape(Bt, T, D)
    k = (jnp.dot(h1_bf, wk_ref[...], preferred_element_type=f32)
         + bk_ref[...]).reshape(Bt, T, D)
    v = (jnp.dot(h1_bf, wv_ref[...], preferred_element_type=f32)
         + bv_ref[...]).reshape(Bt, T, D)

    # All H heads in two batched MXU pushes (no lane-dim head slicing, no sublane
    # concatenate chain): broadcast q along a head axis, zero each copy outside its
    # head's lanes (bf16 0/1 mask), then one QK^T yields every head's score block and
    # one PV yields every head's output; the same disjoint-lane mask selects each
    # head's lanes back out before the head sum.
    mask_bf = hmask_ref[...]                                               # (H*T, D) bf16
    q_big = (jnp.broadcast_to(q.astype(bf16)[:, None, :, :], (Bt, H, T, D))
             .reshape(Bt, H * T, D) * mask_bf)                             # (Bt, H*T, D)
    s = lax.dot_general(q_big, k.astype(bf16),
                        dimension_numbers=(((2,), (2,)), ((0,), (0,))),
                        preferred_element_type=f32) * scale                # (Bt, H*T, T)
    p_att = _softmax_kernel(s, axis=-1)
    o_big = lax.dot_general(p_att.astype(bf16), v.astype(bf16),
                            dimension_numbers=(((2,), (1,)), ((0,), (0,))),
                            preferred_element_type=f32)                    # (Bt, H*T, D)
    o_big = o_big * mask_bf.astype(f32)
    # Head sum: H is tiny & static; tile-aligned (T is a sublane multiple) slices.
    # (A reshape(Bt,H,T,D).sum(axis=1) is equivalent but leans on leading-axis vector
    # reductions in Mosaic; these H-1 adds are negligible and off the critical path.)
    attn = o_big[:, 0:T, :]
    for hh in range(1, H):
        attn = attn + o_big[:, hh * T:(hh + 1) * T, :]                     # (Bt, T, D)
    attn = (jnp.dot(attn.astype(bf16).reshape(Bt * T, D), wo_ref[...],
                    preferred_element_type=f32) + bo_ref[...]).reshape(Bt, T, D)
    t1 = t_in + attn

    # ---- ResidualAttentionBlock: pre-LN MLP with QuickGELU ----
    h2 = _layernorm(t1, ln2w_ref[...], ln2b_ref[...])
    mlp = jnp.dot(h2.astype(bf16).reshape(Bt * T, D), wfc_ref[...],
                  preferred_element_type=f32) + bfc_ref[...]               # (Bt*T, 4D)
    mlp = mlp * jax.nn.sigmoid(1.702 * mlp)                                # QuickGELU, f32
    mlp = (jnp.dot(mlp.astype(bf16), wpr_ref[...],
                   preferred_element_type=f32) + bpr_ref[...]).reshape(Bt, T, D)
    t_out = t1 + mlp                                                       # (Bt, T, D)

    # ---- out_Q / out_K cross-attention back onto x ----
    t_out_bf = t_out.astype(bf16)
    oq = jnp.dot(x2_bf, wq2_ref[...], preferred_element_type=f32).reshape(Bt, L, D)
    ok = jnp.dot(t_out_bf.reshape(Bt * T, D), wk2_ref[...],
                 preferred_element_type=f32).reshape(Bt, T, D)
    s2 = lax.dot_general(oq.astype(bf16), ok.astype(bf16),
                         dimension_numbers=(((2,), (2,)), ((0,), (0,))),
                         preferred_element_type=f32)                       # (Bt, L, T)
    aw2 = _softmax_kernel(s2, axis=-1)
    x_out = x_bf.astype(f32) + lax.dot_general(
        aw2.astype(bf16), t_out_bf,
        dimension_numbers=(((2,), (1,)), ((0,), (0,))),
        preferred_element_type=f32)                                        # (Bt, L, D)

    # D-last stores (no in-kernel lane repacking / relayout risk).
    xout_ref[...] = x_out.astype(xout_ref.dtype)
    tout_ref[...] = t_out.astype(tout_ref.dtype)


# ---------------------------------------------------------------------------
# Wrapper
# ---------------------------------------------------------------------------
_PARAM_ORDER = ['wt', 'ln1w', 'ln1b', 'wq', 'bq', 'wk', 'bk', 'wv', 'bv',
                'wo', 'bo', 'ln2w', 'ln2b', 'wfc', 'bfc', 'wpr', 'bpr',
                'wq2', 'wk2', 'hmask']
_BF16_WEIGHTS = {'wt', 'wq', 'wk', 'wv', 'wo', 'wfc', 'wpr', 'wq2', 'wk2'}


def _prepare_params(params, num_heads):
    """Split the fused QKV projection, build the per-head lane mask (bf16), and cast
    matmul weights to bf16.  All host-/XLA-side, i.e. free relative to the kernel."""
    D = params['wqkv'].shape[0]
    H = num_heads
    hd = D // H
    T = params['wt'].shape[1]
    p = {
        'wt': params['wt'],
        'ln1w': params['ln1w'], 'ln1b': params['ln1b'],
        'wq': params['wqkv'][:, :D],          'bq': params['bqkv'][:, :D],
        'wk': params['wqkv'][:, D:2 * D],     'bk': params['bqkv'][:, D:2 * D],
        'wv': params['wqkv'][:, 2 * D:],      'bv': params['bqkv'][:, 2 * D:],
        'wo': params['wo'], 'bo': params['bo'],
        'ln2w': params['ln2w'], 'ln2b': params['ln2b'],
        'wfc': params['wfc'], 'bfc': params['bfc'],
        'wpr': params['wpr'], 'bpr': params['bpr'],
        'wq2': params['wq2'], 'wk2': params['wk2'],
    }
    # head mask: row block h (T rows) is 1 on head h's hd lanes, 0 elsewhere.
    head_of_row = jnp.arange(H * T, dtype=jnp.int32) // T
    head_of_col = jnp.arange(D, dtype=jnp.int32) // hd
    p['hmask'] = (head_of_row[:, None] == head_of_col[None, :]).astype(jnp.bfloat16)
    for name in _BF16_WEIGHTS:
        p[name] = p[name].astype(jnp.bfloat16)
    return p


def mh_attention_layer(x, params, num_heads, batch_block=None):
    B, L, D = x.shape
    T = params['wt'].shape[1]
    H = num_heads
    assert D % H == 0

    if batch_block is None:
        # Fewer, fatter grid steps (amortize ~0.35us/step overhead + raise MXU
        # M-occupancy).  For B >= 4 keep two parallel steps so both v7x TensorCores
        # have work; for tiny B a single fat step wins on the single-TC v5e/v6e.
        n_blocks = 2 if B >= 4 else 1
        batch_block = pl.cdiv(B, n_blocks)
    grid_b = pl.cdiv(B, batch_block)
    B_pad = grid_b * batch_block

    prepared = _prepare_params(params, num_heads)

    # x only ever feeds the MXU / residual adds: stream it in bf16 (halves the
    # dominant per-step HBM->VMEM bytes).
    x_in = x.astype(jnp.bfloat16)
    if B_pad != B:
        x_in = jnp.pad(x_in, ((0, B_pad - B), (0, 0), (0, 0)))

    in_specs = [pl.BlockSpec((batch_block, L, D), lambda b: (b, 0, 0))]
    args = [x_in]
    for name in _PARAM_ORDER:
        w = prepared[name]
        # Weights never change across the batch grid: whole-array resident in VMEM
        # (no per-step re-DMA, no second pipeline buffer).
        in_specs.append(pl.BlockSpec(memory_space=pltpu.MemorySpace.VMEM))
        args.append(w)

    out_dtype = x.dtype
    out_shape = (jax.ShapeDtypeStruct((B_pad, L, D), out_dtype),
                 jax.ShapeDtypeStruct((B_pad, T, D), out_dtype))
    out_specs = [pl.BlockSpec((batch_block, L, D), lambda b: (b, 0, 0)),
                 pl.BlockSpec((batch_block, T, D), lambda b: (b, 0, 0))]

    # Advisory cost estimate so XLA can overlap this small kernel with neighbours.
    flops = 2 * B * (L * D * T                # tokenizer scores
                     + T * L * D              # t_in
                     + 3 * T * D * D          # q/k/v projections
                     + 2 * (H * T) * T * D    # QK^T + PV (masked all-heads form)
                     + T * D * D              # out proj
                     + 2 * T * D * 4 * D      # MLP
                     + L * D * D + T * D * D  # out_Q / out_K
                     + 2 * L * T * D)         # cross scores + weighted sum
    transcendentals = B * (L * T + (H * T) * T + T * 4 * D + L * T)
    bytes_accessed = (int(x_in.size) * x_in.dtype.itemsize
                      + sum(int(w.size) * w.dtype.itemsize for w in args[1:])
                      + B_pad * (L * D + T * D) * jnp.dtype(out_dtype).itemsize)

    x_out, t_out = pl.pallas_call(
        functools.partial(mh_attention_kernel, num_heads=num_heads),
        out_shape=out_shape,
        grid_spec=pltpu.PrefetchScalarGridSpec(
            num_scalar_prefetch=0,
            grid=(grid_b,),
            in_specs=in_specs,
            out_specs=out_specs),
        compiler_params=pltpu.CompilerParams(
            # batch blocks are independent -> shard the grid across TensorCores (v7x)
            dimension_semantics=("parallel",)),
        cost_estimate=pl.CostEstimate(flops=flops,
                                      transcendentals=transcendentals,
                                      bytes_accessed=bytes_accessed),
    )(*args)

    if B_pad != B:
        x_out = x_out[:B]
        t_out = t_out[:B]
    return x_out, t_out


# ---------------------------------------------------------------------------
# Pure-JAX reference (f32, straightforward per-head loop) for verification.
# ---------------------------------------------------------------------------
def reference(x, params, num_heads):
    B, L, D = x.shape
    hd = D // num_heads
    scale = 1.0 / (hd ** 0.5)

    def one(xb):
        aw = _softmax_ref((xb @ params['wt']).T)
        t_in = aw @ xb
        h = _layernorm(t_in, params['ln1w'][0], params['ln1b'][0])
        qkv = h @ params['wqkv'] + params['bqkv'][0]
        q, k, v = qkv[:, :D], qkv[:, D:2 * D], qkv[:, 2 * D:]
        outs = []
        for hh in range(num_heads):
            sl = slice(hh * hd, (hh + 1) * hd)
            s = _softmax_ref((q[:, sl] @ k[:, sl].T) * scale)
            outs.append(s @ v[:, sl])
        attn = jnp.concatenate(outs, axis=-1) @ params['wo'] + params['bo'][0]
        t1 = t_in + attn
        h2 = _layernorm(t1, params['ln2w'][0], params['ln2b'][0])
        m = h2 @ params['wfc'] + params['bfc'][0]
        m = m * jax.nn.sigmoid(1.702 * m)
        t_out = t1 + m @ params['wpr'] + params['bpr'][0]
        oq = xb @ params['wq2']
        ok = t_out @ params['wk2']
        aw2 = _softmax_ref(oq @ ok.T)
        return xb + aw2 @ t_out, t_out

    return jax.vmap(one)(x)


# ---------------------------------------------------------------------------
# Deterministic parameter construction (synthetic weights; shapes follow __init__).
# ---------------------------------------------------------------------------
def make_params(key, in_dim, num_tokens):
    D, T = in_dim, num_tokens
    ks = jax.random.split(key, 10)
    s = 0.05
    f32 = jnp.float32
    return {
        # tokenizer.token_weight: Linear(D -> T, no bias); stored transposed (D, T)
        'wt':   s * jax.random.normal(ks[0], (D, T), f32),
        # ResidualAttentionBlock params
        'ln1w': jnp.ones((1, D), f32),
        'ln1b': jnp.zeros((1, D), f32),
        'wqkv': s * jax.random.normal(ks[1], (D, 3 * D), f32),   # in_proj_weight.T
        'bqkv': s * jax.random.normal(ks[2], (1, 3 * D), f32),
        'wo':   s * jax.random.normal(ks[3], (D, D), f32),       # out_proj.weight.T
        'bo':   s * jax.random.normal(ks[4], (1, D), f32),
        'ln2w': jnp.ones((1, D), f32),
        'ln2b': jnp.zeros((1, D), f32),
        'wfc':  s * jax.random.normal(ks[5], (D, 4 * D), f32),   # c_fc.weight.T
        'bfc':  s * jax.random.normal(ks[6], (1, 4 * D), f32),
        'wpr':  s * jax.random.normal(ks[7], (4 * D, D), f32),   # c_proj.weight.T
        'bpr':  s * jax.random.normal(ks[8], (1, D), f32),
        # out_Q / out_K: Linear(D -> D, no bias), stored transposed
        'wq2':  s * jax.random.normal(ks[9], (D, D), f32),
        'wk2':  s * jax.random.normal(jax.random.fold_in(key, 99), (D, D), f32),
    }


if __name__ == "__main__":
    # batch, seq (e.g. 8x8 spatial), in_dim=hidden_dim, num_tokens, heads
    B, L, D, T, H = 2, 64, 32, 8, 4

    key = jax.random.PRNGKey(0)
    k_x, k_p = jax.random.split(key)
    x = jax.random.normal(k_x, (B, L, D), jnp.float32)
    params = make_params(k_p, D, T)

    x_out, t_out = mh_attention_layer(x, params, num_heads=H)
    jax.block_until_ready((x_out, t_out))

    x_ref, t_ref = reference(x, params, num_heads=H)
    # bf16 MXU operands, bf16-streamed x, approx reciprocal softmax -> relaxed tolerance.
    assert jnp.allclose(x_out, x_ref, rtol=2e-2, atol=2e-2), "x_out mismatch"
    assert jnp.allclose(t_out, t_ref, rtol=2e-2, atol=2e-2), "t_out mismatch"

    print("KERNEL_OK")
</pallas_src>

<mosaic_0001>
module attributes {stable_mosaic.version = 11 : i64} {
  func.func @mh_attention_kernel(%arg0: i32, %arg1: memref<2x64x32xbf16, #tpu.memory_space<vmem>>, %arg2: memref<32x8xbf16, #tpu.memory_space<vmem>>, %arg3: memref<1x32xf32, #tpu.memory_space<vmem>>, %arg4: memref<1x32xf32, #tpu.memory_space<vmem>>, %arg5: memref<32x32xbf16, #tpu.memory_space<vmem>>, %arg6: memref<1x32xf32, #tpu.memory_space<vmem>>, %arg7: memref<32x32xbf16, #tpu.memory_space<vmem>>, %arg8: memref<1x32xf32, #tpu.memory_space<vmem>>, %arg9: memref<32x32xbf16, #tpu.memory_space<vmem>>, %arg10: memref<1x32xf32, #tpu.memory_space<vmem>>, %arg11: memref<32x32xbf16, #tpu.memory_space<vmem>>, %arg12: memref<1x32xf32, #tpu.memory_space<vmem>>, %arg13: memref<1x32xf32, #tpu.memory_space<vmem>>, %arg14: memref<1x32xf32, #tpu.memory_space<vmem>>, %arg15: memref<32x128xbf16, #tpu.memory_space<vmem>>, %arg16: memref<1x128xf32, #tpu.memory_space<vmem>>, %arg17: memref<128x32xbf16, #tpu.memory_space<vmem>>, %arg18: memref<1x32xf32, #tpu.memory_space<vmem>>, %arg19: memref<32x32xbf16, #tpu.memory_space<vmem>>, %arg20: memref<32x32xbf16, #tpu.memory_space<vmem>>, %arg21: memref<32x32xbf16, #tpu.memory_space<vmem>>, %arg22: memref<2x64x32xf32, #tpu.memory_space<vmem>>, %arg23: memref<2x8x32xf32, #tpu.memory_space<vmem>>) attributes {dimension_semantics = [#tpu.dimension_semantics<parallel>], iteration_bounds = array<i64: 1>, scalar_prefetch = 0 : i64, scratch_operands = 0 : i64, tpu.core_type = #tpu.core_type<tc>, window_params = [{transform_indices = @transform_0, window_bounds = array<i64: 2, 64, 32>}, {pipeline_mode = #tpu.pipeline_mode<synchronous>, transform_indices = @transform_1, window_bounds = array<i64: 32, 8>}, {pipeline_mode = #tpu.pipeline_mode<synchronous>, transform_indices = @transform_2, window_bounds = array<i64: 1, 32>}, {pipeline_mode = #tpu.pipeline_mode<synchronous>, transform_indices = @transform_3, window_bounds = array<i64: 1, 32>}, {pipeline_mode = #tpu.pipeline_mode<synchronous>, transform_indices = @transform_4, window_bounds = array<i64: 32, 32>}, {pipeline_mode = #tpu.pipeline_mode<synchronous>, transform_indices = @transform_5, window_bounds = array<i64: 1, 32>}, {pipeline_mode = #tpu.pipeline_mode<synchronous>, transform_indices = @transform_6, window_bounds = array<i64: 32, 32>}, {pipeline_mode = #tpu.pipeline_mode<synchronous>, transform_indices = @transform_7, window_bounds = array<i64: 1, 32>}, {pipeline_mode = #tpu.pipeline_mode<synchronous>, transform_indices = @transform_8, window_bounds = array<i64: 32, 32>}, {pipeline_mode = #tpu.pipeline_mode<synchronous>, transform_indices = @transform_9, window_bounds = array<i64: 1, 32>}, {pipeline_mode = #tpu.pipeline_mode<synchronous>, transform_indices = @transform_10, window_bounds = array<i64: 32, 32>}, {pipeline_mode = #tpu.pipeline_mode<synchronous>, transform_indices = @transform_11, window_bounds = array<i64: 1, 32>}, {pipeline_mode = #tpu.pipeline_mode<synchronous>, transform_indices = @transform_12, window_bounds = array<i64: 1, 32>}, {pipeline_mode = #tpu.pipeline_mode<synchronous>, transform_indices = @transform_13, window_bounds = array<i64: 1, 32>}, {pipeline_mode = #tpu.pipeline_mode<synchronous>, transform_indices = @transform_14, window_bounds = array<i64: 32, 128>}, {pipeline_mode = #tpu.pipeline_mode<synchronous>, transform_indices = @transform_15, window_bounds = array<i64: 1, 128>}, {pipeline_mode = #tpu.pipeline_mode<synchronous>, transform_indices = @transform_16, window_bounds = array<i64: 128, 32>}, {pipeline_mode = #tpu.pipeline_mode<synchronous>, transform_indices = @transform_17, window_bounds = array<i64: 1, 32>}, {pipeline_mode = #tpu.pipeline_mode<synchronous>, transform_indices = @transform_18, window_bounds = array<i64: 32, 32>}, {pipeline_mode = #tpu.pipeline_mode<synchronous>, transform_indices = @transform_19, window_bounds = array<i64: 32, 32>}, {pipeline_mode = #tpu.pipeline_mode<synchronous>, transform_indices = @transform_20, window_bounds = array<i64: 32, 32>}, {transform_indices = @transform_21, window_bounds = array<i64: 2, 64, 32>}, {transform_indices = @transform_22, window_bounds = array<i64: 2, 8, 32>}]} {
    %c0 = arith.constant 0 : index
    %c0_0 = arith.constant 0 : index
    %c0_1 = arith.constant 0 : index
    %0 = vector.load %arg1[%c0, %c0_0, %c0_1] : memref<2x64x32xbf16, #tpu.memory_space<vmem>>, vector<2x64x32xbf16>
    %1 = vector.shape_cast %0 : vector<2x64x32xbf16> to vector<128x32xbf16>
    %c0_2 = arith.constant 0 : index
    %c0_3 = arith.constant 0 : index
    %2 = vector.load %arg2[%c0_2, %c0_3] : memref<32x8xbf16, #tpu.memory_space<vmem>>, vector<32x8xbf16>
    %cst = arith.constant dense<0.000000e+00> : vector<128x8xf32>
    %3 = tpu.matmul %1, %2, %cst {dimension_numbers = #tpu.dot_dimension_numbers<[1], [0], [0], [1], [0, 0, 1, 1], [], []>} : vector<128x32xbf16>, vector<32x8xbf16>, vector<128x8xf32> -> vector<128x8xf32>
    %4 = vector.shape_cast %3 : vector<128x8xf32> to vector<2x64x8xf32>
    %cst_4 = arith.constant dense<0xFF800000> : vector<2x8xf32>
    %5 = vector.multi_reduction <maximumf>, %4, %cst_4 [1] : vector<2x64x8xf32> to vector<2x8xf32>
    %6 = vector.shape_cast %5 : vector<2x8xf32> to vector<2x1x8xf32>
    %7 = vector.broadcast %6 : vector<2x1x8xf32> to vector<2x64x8xf32>
    %8 = arith.subf %4, %7 : vector<2x64x8xf32>
    %9 = math.exp %8 : vector<2x64x8xf32>
    %cst_5 = arith.constant dense<0.000000e+00> : vector<2x8xf32>
    %10 = vector.multi_reduction <add>, %9, %cst_5 [1] : vector<2x64x8xf32> to vector<2x8xf32>
    %11 = vector.shape_cast %10 : vector<2x8xf32> to vector<2x1x8xf32>
    %12 = tpu.reciprocal %11 {approx = true} : vector<2x1x8xf32> -> vector<2x1x8xf32>
    %13 = vector.broadcast %12 : vector<2x1x8xf32> to vector<2x64x8xf32>
    %14 = arith.mulf %9, %13 : vector<2x64x8xf32>
    %15 = arith.truncf %14 : vector<2x64x8xf32> to vector<2x64x8xbf16>
    %cst_6 = arith.constant dense<0.000000e+00> : vector<2x8x32xf32>
    %16 = tpu.matmul %15, %0, %cst_6 {dimension_numbers = #tpu.dot_dimension_numbers<[1], [1], [2], [2], [0, 0, 0, 2, 1, 2], [0], [0]>} : vector<2x64x8xbf16>, vector<2x64x32xbf16>, vector<2x8x32xf32> -> vector<2x8x32xf32>
    %c0_7 = arith.constant 0 : index
    %c0_8 = arith.constant 0 : index
    %17 = vector.load %arg3[%c0_7, %c0_8] : memref<1x32xf32, #tpu.memory_space<vmem>>, vector<1x32xf32>
    %c0_9 = arith.constant 0 : index
    %c0_10 = arith.constant 0 : index
    %18 = vector.load %arg4[%c0_9, %c0_10] : memref<1x32xf32, #tpu.memory_space<vmem>>, vector<1x32xf32>
    %cst_11 = arith.constant dense<0.000000e+00> : vector<2x8xf32>
    %19 = vector.multi_reduction <add>, %16, %cst_11 [2] : vector<2x8x32xf32> to vector<2x8xf32>
    %20 = vector.shape_cast %19 : vector<2x8xf32> to vector<2x8x1xf32>
    %cst_12 = arith.constant 3.200000e+01 : f32
    %21 = vector.broadcast %cst_12 : f32 to vector<2x8x1xf32>
    %22 = arith.divf %20, %21 : vector<2x8x1xf32>
    %23 = vector.broadcast %22 : vector<2x8x1xf32> to vector<2x8x32xf32>
    %24 = arith.subf %16, %23 : vector<2x8x32xf32>
    %25 = arith.mulf %24, %24 : vector<2x8x32xf32>
    %cst_13 = arith.constant dense<0.000000e+00> : vector<2x8xf32>
    %26 = vector.multi_reduction <add>, %25, %cst_13 [2] : vector<2x8x32xf32> to vector<2x8xf32>
    %27 = vector.shape_cast %26 : vector<2x8xf32> to vector<2x8x1xf32>
    %cst_14 = arith.constant 3.200000e+01 : f32
    %28 = vector.broadcast %cst_14 : f32 to vector<2x8x1xf32>
    %29 = arith.divf %27, %28 : vector<2x8x1xf32>
    %30 = vector.broadcast %22 : vector<2x8x1xf32> to vector<2x8x32xf32>
    %31 = arith.subf %16, %30 : vector<2x8x32xf32>
    %cst_15 = arith.constant 9.99999974E-6 : f32
    %32 = vector.broadcast %cst_15 : f32 to vector<2x8x1xf32>
    %33 = arith.addf %29, %32 : vector<2x8x1xf32>
    %34 = math.rsqrt %33 : vector<2x8x1xf32>
    %35 = vector.broadcast %34 : vector<2x8x1xf32> to vector<2x8x32xf32>
    %36 = arith.mulf %31, %35 : vector<2x8x32xf32>
    %37 = vector.shape_cast %17 : vector<1x32xf32> to vector<1x1x32xf32>
    %38 = vector.broadcast %37 : vector<1x1x32xf32> to vector<2x8x32xf32>
    %39 = arith.mulf %36, %38 : vector<2x8x32xf32>
    %40 = vector.shape_cast %18 : vector<1x32xf32> to vector<1x1x32xf32>
    %41 = vector.broadcast %40 : vector<1x1x32xf32> to vector<2x8x32xf32>
    %42 = arith.addf %39, %41 : vector<2x8x32xf32>
    %43 = arith.truncf %42 : vector<2x8x32xf32> to vector<2x8x32xbf16>
    %44 = vector.shape_cast %43 : vector<2x8x32xbf16> to vector<16x32xbf16>
    %c0_16 = arith.constant 0 : index
    %c0_17 = arith.constant 0 : index
    %45 = vector.load %arg5[%c0_16, %c0_17] : memref<32x32xbf16, #tpu.memory_space<vmem>>, vector<32x32xbf16>
    %cst_18 = arith.constant dense<0.000000e+00> : vector<16x32xf32>
    %46 = tpu.matmul %44, %45, %cst_18 {dimension_numbers = #tpu.dot_dimension_numbers<[1], [0], [0], [1], [0, 0, 1, 1], [], []>} : vector<16x32xbf16>, vector<32x32xbf16>, vector<16x32xf32> -> vector<16x32xf32>
    %c0_19 = arith.constant 0 : index
    %c0_20 = arith.constant 0 : index
    %47 = vector.load %arg6[%c0_19, %c0_20] : memref<1x32xf32, #tpu.memory_space<vmem>>, vector<1x32xf32>
    %48 = vector.broadcast %47 : vector<1x32xf32> to vector<16x32xf32>
    %49 = arith.addf %46, %48 : vector<16x32xf32>
    %50 = vector.shape_cast %49 : vector<16x32xf32> to vector<2x8x32xf32>
    %c0_21 = arith.constant 0 : index
    %c0_22 = arith.constant 0 : index
    %51 = vector.load %arg7[%c0_21, %c0_22] : memref<32x32xbf16, #tpu.memory_space<vmem>>, vector<32x32xbf16>
    %cst_23 = arith.constant dense<0.000000e+00> : vector<16x32xf32>
    %52 = tpu.matmul %44, %51, %cst_23 {dimension_numbers = #tpu.dot_dimension_numbers<[1], [0], [0], [1], [0, 0, 1, 1], [], []>} : vector<16x32xbf16>, vector<32x32xbf16>, vector<16x32xf32> -> vector<16x32xf32>
    %c0_24 = arith.constant 0 : index
    %c0_25 = arith.constant 0 : index
    %53 = vector.load %arg8[%c0_24, %c0_25] : memref<1x32xf32, #tpu.memory_space<vmem>>, vector<1x32xf32>
    %54 = vector.broadcast %53 : vector<1x32xf32> to vector<16x32xf32>
    %55 = arith.addf %52, %54 : vector<16x32xf32>
    %56 = vector.shape_cast %55 : vector<16x32xf32> to vector<2x8x32xf32>
    %c0_26 = arith.constant 0 : index
    %c0_27 = arith.constant 0 : index
    %57 = vector.load %arg9[%c0_26, %c0_27] : memref<32x32xbf16, #tpu.memory_space<vmem>>, vector<32x32xbf16>
    %cst_28 = arith.constant dense<0.000000e+00> : vector<16x32xf32>
    %58 = tpu.matmul %44, %57, %cst_28 {dimension_numbers = #tpu.dot_dimension_numbers<[1], [0], [0], [1], [0, 0, 1, 1], [], []>} : vector<16x32xbf16>, vector<32x32xbf16>, vector<16x32xf32> -> vector<16x32xf32>
    %c0_29 = arith.constant 0 : index
    %c0_30 = arith.constant 0 : index
    %59 = vector.load %arg10[%c0_29, %c0_30] : memref<1x32xf32, #tpu.memory_space<vmem>>, vector<1x32xf32>
    %60 = vector.broadcast %59 : vector<1x32xf32> to vector<16x32xf32>
    %61 = arith.addf %58, %60 : vector<16x32xf32>
    %62 = vector.shape_cast %61 : vector<16x32xf32> to vector<2x8x32xf32>
    %c0_31 = arith.constant 0 : index
    %c0_32 = arith.constant 0 : index
    %63 = vector.load %arg21[%c0_31, %c0_32] : memref<32x32xbf16, #tpu.memory_space<vmem>>, vector<32x32xbf16>
    %64 = arith.truncf %50 : vector<2x8x32xf32> to vector<2x8x32xbf16>
    %65 = vector.shape_cast %64 : vector<2x8x32xbf16> to vector<2x1x8x32xbf16>
    %66 = vector.shape_cast %65 : vector<2x1x8x32xbf16> to vector<2x1x8x32xbf16>
    %67 = vector.broadcast %66 : vector<2x1x8x32xbf16> to vector<2x4x8x32xbf16>
    %68 = vector.shape_cast %67 : vector<2x4x8x32xbf16> to vector<2x32x32xbf16>
    %69 = vector.shape_cast %63 : vector<32x32xbf16> to vector<1x32x32xbf16>
    %70 = vector.broadcast %69 : vector<1x32x32xbf16> to vector<2x32x32xbf16>
    %71 = arith.mulf %68, %70 : vector<2x32x32xbf16>
    %72 = arith.truncf %56 : vector<2x8x32xf32> to vector<2x8x32xbf16>
    %cst_33 = arith.constant dense<0.000000e+00> : vector<2x32x8xf32>
    %73 = tpu.matmul %71, %72, %cst_33 {dimension_numbers = #tpu.dot_dimension_numbers<[2], [2], [1], [1], [0, 0, 0, 1, 1, 1], [0], [0]>} : vector<2x32x32xbf16>, vector<2x8x32xbf16>, vector<2x32x8xf32> -> vector<2x32x8xf32>
    %cst_34 = arith.constant 0.353553385 : f32
    %74 = vector.broadcast %cst_34 : f32 to vector<2x32x8xf32>
    %75 = arith.mulf %73, %74 : vector<2x32x8xf32>
    %cst_35 = arith.constant dense<0xFF800000> : vector<2x32xf32>
    %76 = vector.multi_reduction <maximumf>, %75, %cst_35 [2] : vector<2x32x8xf32> to vector<2x32xf32>
    %77 = vector.shape_cast %76 : vector<2x32xf32> to vector<2x32x1xf32>
    %78 = vector.broadcast %77 : vector<2x32x1xf32> to vector<2x32x8xf32>
    %79 = arith.subf %75, %78 : vector<2x32x8xf32>
    %80 = math.exp %79 : vector<2x32x8xf32>
    %cst_36 = arith.constant dense<0.000000e+00> : vector<2x32xf32>
    %81 = vector.multi_reduction <add>, %80, %cst_36 [2] : vector<2x32x8xf32> to vector<2x32xf32>
    %82 = vector.shape_cast %81 : vector<2x32xf32> to vector<2x32x1xf32>
    %83 = tpu.reciprocal %82 {approx = true} : vector<2x32x1xf32> -> vector<2x32x1xf32>
    %84 = vector.broadcast %83 : vector<2x32x1xf32> to vector<2x32x8xf32>
    %85 = arith.mulf %80, %84 : vector<2x32x8xf32>
    %86 = arith.truncf %85 : vector<2x32x8xf32> to vector<2x32x8xbf16>
    %87 = arith.truncf %62 : vector<2x8x32xf32> to vector<2x8x32xbf16>
    %cst_37 = arith.constant dense<0.000000e+00> : vector<2x32x32xf32>
    %88 = tpu.matmul %86, %87, %cst_37 {dimension_numbers = #tpu.dot_dimension_numbers<[2], [1], [1], [2], [0, 0, 0, 1, 1, 2], [0], [0]>} : vector<2x32x8xbf16>, vector<2x8x32xbf16>, vector<2x32x32xf32> -> vector<2x32x32xf32>
    %89 = arith.extf %63 : vector<32x32xbf16> to vector<32x32xf32>
    %90 = vector.shape_cast %89 : vector<32x32xf32> to vector<1x32x32xf32>
    %91 = vector.broadcast %90 : vector<1x32x32xf32> to vector<2x32x32xf32>
    %92 = arith.mulf %88, %91 : vector<2x32x32xf32>
    %93 = vector.extract_strided_slice %92 {offsets = [0, 0, 0], sizes = [2, 8, 32], strides = [1, 1, 1]} : vector<2x32x32xf32> to vector<2x8x32xf32>
    %94 = vector.extract_strided_slice %92 {offsets = [0, 8, 0], sizes = [2, 8, 32], strides = [1, 1, 1]} : vector<2x32x32xf32> to vector<2x8x32xf32>
    %95 = arith.addf %93, %94 : vector<2x8x32xf32>
    %96 = vector.extract_strided_slice %92 {offsets = [0, 16, 0], sizes = [2, 8, 32], strides = [1, 1, 1]} : vector<2x32x32xf32> to vector<2x8x32xf32>
    %97 = arith.addf %95, %96 : vector<2x8x32xf32>
    %98 = vector.extract_strided_slice %92 {offsets = [0, 24, 0], sizes = [2, 8, 32], strides = [1, 1, 1]} : vector<2x32x32xf32> to vector<2x8x32xf32>
    %99 = arith.addf %97, %98 : vector<2x8x32xf32>
    %100 = arith.truncf %99 : vector<2x8x32xf32> to vector<2x8x32xbf16>
    %101 = vector.shape_cast %100 : vector<2x8x32xbf16> to vector<16x32xbf16>
    %c0_38 = arith.constant 0 : index
    %c0_39 = arith.constant 0 : index
    %102 = vector.load %arg11[%c0_38, %c0_39] : memref<32x32xbf16, #tpu.memory_space<vmem>>, vector<32x32xbf16>
    %cst_40 = arith.constant dense<0.000000e+00> : vector<16x32xf32>
    %103 = tpu.matmul %101, %102, %cst_40 {dimension_numbers = #tpu.dot_dimension_numbers<[1], [0], [0], [1], [0, 0, 1, 1], [], []>} : vector<16x32xbf16>, vector<32x32xbf16>, vector<16x32xf32> -> vector<16x32xf32>
    %c0_41 = arith.constant 0 : index
    %c0_42 = arith.constant 0 : index
    %104 = vector.load %arg12[%c0_41, %c0_42] : memref<1x32xf32, #tpu.memory_space<vmem>>, vector<1x32xf32>
    %105 = vector.broadcast %104 : vector<1x32xf32> to vector<16x32xf32>
    %106 = arith.addf %103, %105 : vector<16x32xf32>
    %107 = vector.shape_cast %106 : vector<16x32xf32> to vector<2x8x32xf32>
    %108 = arith.addf %16, %107 : vector<2x8x32xf32>
    %c0_43 = arith.constant 0 : index
    %c0_44 = arith.constant 0 : index
    %109 = vector.load %arg13[%c0_43, %c0_44] : memref<1x32xf32, #tpu.memory_space<vmem>>, vector<1x32xf32>
    %c0_45 = arith.constant 0 : index
    %c0_46 = arith.constant 0 : index
    %110 = vector.load %arg14[%c0_45, %c0_46] : memref<1x32xf32, #tpu.memory_space<vmem>>, vector<1x32xf32>
    %cst_47 = arith.constant dense<0.000000e+00> : vector<2x8xf32>
    %111 = vector.multi_reduction <add>, %108, %cst_47 [2] : vector<2x8x32xf32> to vector<2x8xf32>
    %112 = vector.shape_cast %111 : vector<2x8xf32> to vector<2x8x1xf32>
    %cst_48 = arith.constant 3.200000e+01 : f32
    %113 = vector.broadcast %cst_48 : f32 to vector<2x8x1xf32>
    %114 = arith.divf %112, %113 : vector<2x8x1xf32>
    %115 = vector.broadcast %114 : vector<2x8x1xf32> to vector<2x8x32xf32>
    %116 = arith.subf %108, %115 : vector<2x8x32xf32>
    %117 = arith.mulf %116, %116 : vector<2x8x32xf32>
    %cst_49 = arith.constant dense<0.000000e+00> : vector<2x8xf32>
    %118 = vector.multi_reduction <add>, %117, %cst_49 [2] : vector<2x8x32xf32> to vector<2x8xf32>
    %119 = vector.shape_cast %118 : vector<2x8xf32> to vector<2x8x1xf32>
    %cst_50 = arith.constant 3.200000e+01 : f32
    %120 = vector.broadcast %cst_50 : f32 to vector<2x8x1xf32>
    %121 = arith.divf %119, %120 : vector<2x8x1xf32>
    %122 = vector.broadcast %114 : vector<2x8x1xf32> to vector<2x8x32xf32>
    %123 = arith.subf %108, %122 : vector<2x8x32xf32>
    %cst_51 = arith.constant 9.99999974E-6 : f32
    %124 = vector.broadcast %cst_51 : f32 to vector<2x8x1xf32>
    %125 = arith.addf %121, %124 : vector<2x8x1xf32>
    %126 = math.rsqrt %125 : vector<2x8x1xf32>
    %127 = vector.broadcast %126 : vector<2x8x1xf32> to vector<2x8x32xf32>
    %128 = arith.mulf %123, %127 : vector<2x8x32xf32>
    %129 = vector.shape_cast %109 : vector<1x32xf32> to vector<1x1x32xf32>
    %130 = vector.broadcast %129 : vector<1x1x32xf32> to vector<2x8x32xf32>
    %131 = arith.mulf %128, %130 : vector<2x8x32xf32>
    %132 = vector.shape_cast %110 : vector<1x32xf32> to vector<1x1x32xf32>
    %133 = vector.broadcast %132 : vector<1x1x32xf32> to vector<2x8x32xf32>
    %134 = arith.addf %131, %133 : vector<2x8x32xf32>
    %135 = arith.truncf %134 : vector<2x8x32xf32> to vector<2x8x32xbf16>
    %136 = vector.shape_cast %135 : vector<2x8x32xbf16> to vector<16x32xbf16>
    %c0_52 = arith.constant 0 : index
    %c0_53 = arith.constant 0 : index
    %137 = vector.load %arg15[%c0_52, %c0_53] : memref<32x128xbf16, #tpu.memory_space<vmem>>, vector<32x128xbf16>
    %cst_54 = arith.constant dense<0.000000e+00> : vector<16x128xf32>
    %138 = tpu.matmul %136, %137, %cst_54 {dimension_numbers = #tpu.dot_dimension_numbers<[1], [0], [0], [1], [0, 0, 1, 1], [], []>} : vector<16x32xbf16>, vector<32x128xbf16>, vector<16x128xf32> -> vector<16x128xf32>
    %c0_55 = arith.constant 0 : index
    %c0_56 = arith.constant 0 : index
    %139 = vector.load %arg16[%c0_55, %c0_56] : memref<1x128xf32, #tpu.memory_space<vmem>>, vector<1x128xf32>
    %140 = vector.broadcast %139 : vector<1x128xf32> to vector<16x128xf32>
    %141 = arith.addf %138, %140 : vector<16x128xf32>
    %cst_57 = arith.constant 1.702000e+00 : f32
    %142 = vector.broadcast %cst_57 : f32 to vector<16x128xf32>
    %143 = arith.mulf %142, %141 : vector<16x128xf32>
    %144 = arith.negf %143 : vector<16x128xf32>
    %145 = math.exp %144 : vector<16x128xf32>
    %cst_58 = arith.constant 1.000000e+00 : f32
    %146 = vector.broadcast %cst_58 : f32 to vector<16x128xf32>
    %147 = arith.addf %146, %145 : vector<16x128xf32>
    %148 = arith.divf %146, %147 : vector<16x128xf32>
    %149 = arith.mulf %141, %148 : vector<16x128xf32>
    %150 = arith.truncf %149 : vector<16x128xf32> to vector<16x128xbf16>
    %c0_59 = arith.constant 0 : index
    %c0_60 = arith.constant 0 : index
    %151 = vector.load %arg17[%c0_59, %c0_60] : memref<128x32xbf16, #tpu.memory_space<vmem>>, vector<128x32xbf16>
    %cst_61 = arith.constant dense<0.000000e+00> : vector<16x32xf32>
    %152 = tpu.matmul %150, %151, %cst_61 {dimension_numbers = #tpu.dot_dimension_numbers<[1], [0], [0], [1], [0, 0, 1, 1], [], []>} : vector<16x128xbf16>, vector<128x32xbf16>, vector<16x32xf32> -> vector<16x32xf32>
    %c0_62 = arith.constant 0 : index
    %c0_63 = arith.constant 0 : index
    %153 = vector.load %arg18[%c0_62, %c0_63] : memref<1x32xf32, #tpu.memory_space<vmem>>, vector<1x32xf32>
    %154 = vector.broadcast %153 : vector<1x32xf32> to vector<16x32xf32>
    %155 = arith.addf %152, %154 : vector<16x32xf32>
    %156 = vector.shape_cast %155 : vector<16x32xf32> to vector<2x8x32xf32>
    %157 = arith.addf %108, %156 : vector<2x8x32xf32>
    %158 = arith.truncf %157 : vector<2x8x32xf32> to vector<2x8x32xbf16>
    %c0_64 = arith.constant 0 : index
    %c0_65 = arith.constant 0 : index
    %159 = vector.load %arg19[%c0_64, %c0_65] : memref<32x32xbf16, #tpu.memory_space<vmem>>, vector<32x32xbf16>
    %cst_66 = arith.constant dense<0.000000e+00> : vector<128x32xf32>
    %160 = tpu.matmul %1, %159, %cst_66 {dimension_numbers = #tpu.dot_dimension_numbers<[1], [0], [0], [1], [0, 0, 1, 1], [], []>} : vector<128x32xbf16>, vector<32x32xbf16>, vector<128x32xf32> -> vector<128x32xf32>
    %161 = vector.shape_cast %160 : vector<128x32xf32> to vector<2x64x32xf32>
    %162 = vector.shape_cast %158 : vector<2x8x32xbf16> to vector<16x32xbf16>
    %c0_67 = arith.constant 0 : index
    %c0_68 = arith.constant 0 : index
    %163 = vector.load %arg20[%c0_67, %c0_68] : memref<32x32xbf16, #tpu.memory_space<vmem>>, vector<32x32xbf16>
    %cst_69 = arith.constant dense<0.000000e+00> : vector<16x32xf32>
    %164 = tpu.matmul %162, %163, %cst_69 {dimension_numbers = #tpu.dot_dimension_numbers<[1], [0], [0], [1], [0, 0, 1, 1], [], []>} : vector<16x32xbf16>, vector<32x32xbf16>, vector<16x32xf32> -> vector<16x32xf32>
    %165 = vector.shape_cast %164 : vector<16x32xf32> to vector<2x8x32xf32>
    %166 = arith.truncf %161 : vector<2x64x32xf32> to vector<2x64x32xbf16>
    %167 = arith.truncf %165 : vector<2x8x32xf32> to vector<2x8x32xbf16>
    %cst_70 = arith.constant dense<0.000000e+00> : vector<2x64x8xf32>
    %168 = tpu.matmul %166, %167, %cst_70 {dimension_numbers = #tpu.dot_dimension_numbers<[2], [2], [1], [1], [0, 0, 0, 1, 1, 1], [0], [0]>} : vector<2x64x32xbf16>, vector<2x8x32xbf16>, vector<2x64x8xf32> -> vector<2x64x8xf32>
    %cst_71 = arith.constant dense<0xFF800000> : vector<2x64xf32>
    %169 = vector.multi_reduction <maximumf>, %168, %cst_71 [2] : vector<2x64x8xf32> to vector<2x64xf32>
    %170 = vector.shape_cast %169 : vector<2x64xf32> to vector<2x64x1xf32>
    %171 = vector.broadcast %170 : vector<2x64x1xf32> to vector<2x64x8xf32>
    %172 = arith.subf %168, %171 : vector<2x64x8xf32>
    %173 = math.exp %172 : vector<2x64x8xf32>
    %cst_72 = arith.constant dense<0.000000e+00> : vector<2x64xf32>
    %174 = vector.multi_reduction <add>, %173, %cst_72 [2] : vector<2x64x8xf32> to vector<2x64xf32>
    %175 = vector.shape_cast %174 : vector<2x64xf32> to vector<2x64x1xf32>
    %176 = tpu.reciprocal %175 {approx = true} : vector<2x64x1xf32> -> vector<2x64x1xf32>
    %177 = vector.broadcast %176 : vector<2x64x1xf32> to vector<2x64x8xf32>
    %178 = arith.mulf %173, %177 : vector<2x64x8xf32>
    %179 = arith.extf %0 : vector<2x64x32xbf16> to vector<2x64x32xf32>
    %180 = arith.truncf %178 : vector<2x64x8xf32> to vector<2x64x8xbf16>
    %cst_73 = arith.constant dense<0.000000e+00> : vector<2x64x32xf32>
    %181 = tpu.matmul %180, %158, %cst_73 {dimension_numbers = #tpu.dot_dimension_numbers<[2], [1], [1], [2], [0, 0, 0, 1, 1, 2], [0], [0]>} : vector<2x64x8xbf16>, vector<2x8x32xbf16>, vector<2x64x32xf32> -> vector<2x64x32xf32>
    %182 = arith.addf %179, %181 : vector<2x64x32xf32>
    %c0_74 = arith.constant 0 : index
    %c0_75 = arith.constant 0 : index
    %c0_76 = arith.constant 0 : index
    %183 = vector.load %arg22[%c0_74, %c0_75, %c0_76] : memref<2x64x32xf32, #tpu.memory_space<vmem>>, vector<2x64x32xf32>
    tpu.vector_store %arg22[%c0_74, %c0_75, %c0_76], %182 {strides = array<i32>} : memref<2x64x32xf32, #tpu.memory_space<vmem>>, vector<2x64x32xf32>,
    %c0_77 = arith.constant 0 : index
    %c0_78 = arith.constant 0 : index
    %c0_79 = arith.constant 0 : index
    %184 = vector.load %arg23[%c0_77, %c0_78, %c0_79] : memref<2x8x32xf32, #tpu.memory_space<vmem>>, vector<2x8x32xf32>
    tpu.vector_store %arg23[%c0_77, %c0_78, %c0_79], %157 {strides = array<i32>} : memref<2x8x32xf32, #tpu.memory_space<vmem>>, vector<2x8x32xf32>,
    return
  }
  func.func @transform_0(%arg0: i32) -> (i32, i32, i32) {
    %c0_i32 = arith.constant 0 : i32
    %c0_i32_0 = arith.constant 0 : i32
    %c0_i32_1 = arith.constant 0 : i32
    return %arg0, %c0_i32, %c0_i32_0 : i32, i32, i32
  }
  func.func @transform_1(%arg0: i32) -> (i32, i32) {
    %c0_i32 = arith.constant 0 : i32
    %c0_i32_0 = arith.constant 0 : i32
    %c0_i32_1 = arith.constant 0 : i32
    return %c0_i32, %c0_i32_0 : i32, i32
  }
  func.func @transform_2(%arg0: i32) -> (i32, i32) {
    %c0_i32 = arith.constant 0 : i32
    %c0_i32_0 = arith.constant 0 : i32
    %c0_i32_1 = arith.constant 0 : i32
    return %c0_i32, %c0_i32_0 : i32, i32
  }
  func.func @transform_3(%arg0: i32) -> (i32, i32) {
    %c0_i32 = arith.constant 0 : i32
    %c0_i32_0 = arith.constant 0 : i32
    %c0_i32_1 = arith.constant 0 : i32
    return %c0_i32, %c0_i32_0 : i32, i32
  }
  func.func @transform_4(%arg0: i32) -> (i32, i32) {
    %c0_i32 = arith.constant 0 : i32
    %c0_i32_0 = arith.constant 0 : i32
    %c0_i32_1 = arith.constant 0 : i32
    return %c0_i32, %c0_i32_0 : i32, i32
  }
  func.func @transform_5(%arg0: i32) -> (i32, i32) {
    %c0_i32 = arith.constant 0 : i32
    %c0_i32_0 = arith.constant 0 : i32
    %c0_i32_1 = arith.constant 0 : i32
    return %c0_i32, %c0_i32_0 : i32, i32
  }
  func.func @transform_6(%arg0: i32) -> (i32, i32) {
    %c0_i32 = arith.constant 0 : i32
    %c0_i32_0 = arith.constant 0 : i32
    %c0_i32_1 = arith.constant 0 : i32
    return %c0_i32, %c0_i32_0 : i32, i32
  }
  func.func @transform_7(%arg0: i32) -> (i32, i32) {
    %c0_i32 = arith.constant 0 : i32
    %c0_i32_0 = arith.constant 0 : i32
    %c0_i32_1 = arith.constant 0 : i32
    return %c0_i32, %c0_i32_0 : i32, i32
  }
  func.func @transform_8(%arg0: i32) -> (i32, i32) {
    %c0_i32 = arith.constant 0 : i32
    %c0_i32_0 = arith.constant 0 : i32
    %c0_i32_1 = arith.constant 0 : i32
    return %c0_i32, %c0_i32_0 : i32, i32
  }
  func.func @transform_9(%arg0: i32) -> (i32, i32) {
    %c0_i32 = arith.constant 0 : i32
    %c0_i32_0 = arith.constant 0 : i32
    %c0_i32_1 = arith.constant 0 : i32
    return %c0_i32, %c0_i32_0 : i32, i32
  }
  func.func @transform_10(%arg0: i32) -> (i32, i32) {
    %c0_i32 = arith.constant 0 : i32
    %c0_i32_0 = arith.constant 0 : i32
    %c0_i32_1 = arith.constant 0 : i32
    return %c0_i32, %c0_i32_0 : i32, i32
  }
  func.func @transform_11(%arg0: i32) -> (i32, i32) {
    %c0_i32 = arith.constant 0 : i32
    %c0_i32_0 = arith.constant 0 : i32
    %c0_i32_1 = arith.constant 0 : i32
    return %c0_i32, %c0_i32_0 : i32, i32
  }
  func.func @transform_12(%arg0: i32) -> (i32, i32) {
    %c0_i32 = arith.constant 0 : i32
    %c0_i32_0 = arith.constant 0 : i32
    %c0_i32_1 = arith.constant 0 : i32
    return %c0_i32, %c0_i32_0 : i32, i32
  }
  func.func @transform_13(%arg0: i32) -> (i32, i32) {
    %c0_i32 = arith.constant 0 : i32
    %c0_i32_0 = arith.constant 0 : i32
    %c0_i32_1 = arith.constant 0 : i32
    return %c0_i32, %c0_i32_0 : i32, i32
  }
  func.func @transform_14(%arg0: i32) -> (i32, i32) {
    %c0_i32 = arith.constant 0 : i32
    %c0_i32_0 = arith.constant 0 : i32
    %c0_i32_1 = arith.constant 0 : i32
    return %c0_i32, %c0_i32_0 : i32, i32
  }
  func.func @transform_15(%arg0: i32) -> (i32, i32) {
    %c0_i32 = arith.constant 0 : i32
    %c0_i32_0 = arith.constant 0 : i32
    %c0_i32_1 = arith.constant 0 : i32
    return %c0_i32, %c0_i32_0 : i32, i32
  }
  func.func @transform_16(%arg0: i32) -> (i32, i32) {
    %c0_i32 = arith.constant 0 : i32
    %c0_i32_0 = arith.constant 0 : i32
    %c0_i32_1 = arith.constant 0 : i32
    return %c0_i32, %c0_i32_0 : i32, i32
  }
  func.func @transform_17(%arg0: i32) -> (i32, i32) {
    %c0_i32 = arith.constant 0 : i32
    %c0_i32_0 = arith.constant 0 : i32
    %c0_i32_1 = arith.constant 0 : i32
    return %c0_i32, %c0_i32_0 : i32, i32
  }
  func.func @transform_18(%arg0: i32) -> (i32, i32) {
    %c0_i32 = arith.constant 0 : i32
    %c0_i32_0 = arith.constant 0 : i32
    %c0_i32_1 = arith.constant 0 : i32
    return %c0_i32, %c0_i32_0 : i32, i32
  }
  func.func @transform_19(%arg0: i32) -> (i32, i32) {
    %c0_i32 = arith.constant 0 : i32
    %c0_i32_0 = arith.constant 0 : i32
    %c0_i32_1 = arith.constant 0 : i32
    return %c0_i32, %c0_i32_0 : i32, i32
  }
  func.func @transform_20(%arg0: i32) -> (i32, i32) {
    %c0_i32 = arith.constant 0 : i32
    %c0_i32_0 = arith.constant 0 : i32
    %c0_i32_1 = arith.constant 0 : i32
    return %c0_i32, %c0_i32_0 : i32, i32
  }
  func.func @transform_21(%arg0: i32) -> (i32, i32, i32) {
    %c0_i32 = arith.constant 0 : i32
    %c0_i32_0 = arith.constant 0 : i32
    %c0_i32_1 = arith.constant 0 : i32
    return %arg0, %c0_i32, %c0_i32_0 : i32, i32, i32
  }
  func.func @transform_22(%arg0: i32) -> (i32, i32, i32) {
    %c0_i32 = arith.constant 0 : i32
    %c0_i32_0 = arith.constant 0 : i32
    %c0_i32_1 = arith.constant 0 : i32
    return %arg0, %c0_i32, %c0_i32_0 : i32, i32, i32
  }
}

</mosaic_0001>

<llo_original>
// kernel: tpu_custom_call.1
$region0: #{tpu_custom_call.1}
  #allocation0 [shape = 'u32[]', space=smem, size = 0x4, offset = 0x4, fixed_abs, tag = 'smem constant byte address 0x4 - core index']
  #allocation1 [shape = 'u32[144,128]{1,0:T(1,128)}', space=vmem, size = 0x12000, scoped, tag = 'internal scratch']
  %s0 = inlined_call_operand.vmem [shape: bf16[2,64,32], index: 0, kind: input, shape index: {}]
  %s1 = inlined_call_operand.vmem [shape: bf16[32,8], index: 1, kind: input, shape index: {}]
  %s2 = inlined_call_operand.vmem [shape: f32[1,32], index: 2, kind: input, shape index: {}]
  %s3 = inlined_call_operand.vmem [shape: f32[1,32], index: 3, kind: input, shape index: {}]
  %s4 = inlined_call_operand.vmem [shape: bf16[32,32], index: 4, kind: input, shape index: {}]
  %s5 = inlined_call_operand.vmem [shape: f32[1,32], index: 5, kind: input, shape index: {}]
  %s6 = inlined_call_operand.vmem [shape: bf16[32,32], index: 6, kind: input, shape index: {}]
  %s7 = inlined_call_operand.vmem [shape: f32[1,32], index: 7, kind: input, shape index: {}]
  %s8 = inlined_call_operand.vmem [shape: bf16[32,32], index: 8, kind: input, shape index: {}]
  %s9 = inlined_call_operand.vmem [shape: f32[1,32], index: 9, kind: input, shape index: {}]
  %s10 = inlined_call_operand.vmem [shape: bf16[32,32], index: 10, kind: input, shape index: {}]
  %s11 = inlined_call_operand.vmem [shape: f32[1,32], index: 11, kind: input, shape index: {}]
  %s12 = inlined_call_operand.vmem [shape: f32[1,32], index: 12, kind: input, shape index: {}]
  %s13 = inlined_call_operand.vmem [shape: f32[1,32], index: 13, kind: input, shape index: {}]
  %s14 = inlined_call_operand.vmem [shape: bf16[32,128], index: 14, kind: input, shape index: {}]
  %s15 = inlined_call_operand.vmem [shape: f32[1,128], index: 15, kind: input, shape index: {}]
  %s16 = inlined_call_operand.vmem [shape: bf16[128,32], index: 16, kind: input, shape index: {}]
  %s17 = inlined_call_operand.vmem [shape: f32[1,32], index: 17, kind: input, shape index: {}]
  %s18 = inlined_call_operand.vmem [shape: bf16[32,32], index: 18, kind: input, shape index: {}]
  %s19 = inlined_call_operand.vmem [shape: bf16[32,32], index: 19, kind: input, shape index: {}]
  %s20 = inlined_call_operand.vmem [shape: bf16[32,32], index: 20, kind: input, shape index: {}]
  %s21 = inlined_call_operand.vmem [shape: f32[2,64,32], index: 21, kind: output, shape index: {0}]
  %s22 = inlined_call_operand.hbm [shape: f32[2,8,32], index: 22, kind: output, shape index: {1}]
  %23 = xla_tuple %s21, %s22
  %s24 = sld [smem:[#allocation0]]
  $region102: #{tpu_custom_call.1} parent=0
    _
  %s26 = ssub.s32 1, %s24
  %s27 = scalar_select 0, %s26, %s24
  $region1: #{tpu_custom_call.1} parent=0
    #allocation2 [shape = 'u8[8192]{0}', space=vmem, size = 0x2000, scoped, tag = 'output window, operand 1, single buffered']
    #allocation3 [shape = 's32[1]{0}', space=sflag, size = 0x4, scoped, tag = 'scoped memory for tpu_custom_call.1']
    %28 = vsyncpa [#allocation3], 0
    // Predicated region
    $region2: #{tpu_custom_call.1} parent=1 // pred_check
      _
    $region3: #{tpu_custom_call.1} parent=1 // pred_check_branch
      %30 = sbr.rel (0) target = $region5
    $region4: #{tpu_custom_call.1} parent=1 // pred_region
      _
    $region5: #{tpu_custom_call.1} parent=1 // pred_fallthru
      _
    // Predicated region
    $region6: #{tpu_custom_call.1} parent=1 // pred_check
      _
    $region7: #{tpu_custom_call.1} parent=1 // pred_check_branch
      %32 = sbr.rel (0) target = $region9
    $region8: #{tpu_custom_call.1} parent=1 // pred_region
      _
    $region9: #{tpu_custom_call.1} parent=1 // pred_fallthru
      _
    // Predicated region
    $region10: #{tpu_custom_call.1} parent=1 // pred_check
      _
    $region11: #{tpu_custom_call.1} parent=1 // pred_check_branch
      %34 = sbr.rel (0) target = $region13
    $region12: #{tpu_custom_call.1} parent=1 // pred_region
      _
    $region13: #{tpu_custom_call.1} parent=1 // pred_fallthru
      _
    // Predicated region
    $region14: #{tpu_custom_call.1} parent=1 // pred_check
      _
    $region15: #{tpu_custom_call.1} parent=1 // pred_check_branch
      %36 = sbr.rel (0) target = $region17
    $region16: #{tpu_custom_call.1} parent=1 // pred_region
      _
    $region17: #{tpu_custom_call.1} parent=1 // pred_fallthru
      _
    // Predicated region
    $region18: #{tpu_custom_call.1} parent=1 // pred_check
      _
    $region19: #{tpu_custom_call.1} parent=1 // pred_check_branch
      %38 = sbr.rel (0) target = $region21
    $region20: #{tpu_custom_call.1} parent=1 // pred_region
      _
    $region21: #{tpu_custom_call.1} parent=1 // pred_fallthru
      _
    // Predicated region
    $region22: #{tpu_custom_call.1} parent=1 // pred_check
      _
    $region23: #{tpu_custom_call.1} parent=1 // pred_check_branch
      %40 = sbr.rel (0) target = $region25
    $region24: #{tpu_custom_call.1} parent=1 // pred_region
      _
    $region25: #{tpu_custom_call.1} parent=1 // pred_fallthru
      _
    // Predicated region
    $region26: #{tpu_custom_call.1} parent=1 // pred_check
      _
    $region27: #{tpu_custom_call.1} parent=1 // pred_check_branch
      %42 = sbr.rel (0) target = $region29
    $region28: #{tpu_custom_call.1} parent=1 // pred_region
      _
    $region29: #{tpu_custom_call.1} parent=1 // pred_fallthru
      _
    // Predicated region
    $region30: #{tpu_custom_call.1} parent=1 // pred_check
      _
    $region31: #{tpu_custom_call.1} parent=1 // pred_check_branch
      %44 = sbr.rel (0) target = $region33
    $region32: #{tpu_custom_call.1} parent=1 // pred_region
      _
    $region33: #{tpu_custom_call.1} parent=1 // pred_fallthru
      _
    // Predicated region
    $region34: #{tpu_custom_call.1} parent=1 // pred_check
      _
    $region35: #{tpu_custom_call.1} parent=1 // pred_check_branch
      %46 = sbr.rel (0) target = $region37
    $region36: #{tpu_custom_call.1} parent=1 // pred_region
      _
    $region37: #{tpu_custom_call.1} parent=1 // pred_fallthru
      _
    // Predicated region
    $region38: #{tpu_custom_call.1} parent=1 // pred_check
      _
    $region39: #{tpu_custom_call.1} parent=1 // pred_check_branch
      %48 = sbr.rel (0) target = $region41
    $region40: #{tpu_custom_call.1} parent=1 // pred_region
      _
    $region41: #{tpu_custom_call.1} parent=1 // pred_fallthru
      _
    // Predicated region
    $region42: #{tpu_custom_call.1} parent=1 // pred_check
      _
    $region43: #{tpu_custom_call.1} parent=1 // pred_check_branch
      %50 = sbr.rel (0) target = $region45
    $region44: #{tpu_custom_call.1} parent=1 // pred_region
      _
    $region45: #{tpu_custom_call.1} parent=1 // pred_fallthru
      _
    // Predicated region
    $region46: #{tpu_custom_call.1} parent=1 // pred_check
      _
    $region47: #{tpu_custom_call.1} parent=1 // pred_check_branch
      %52 = sbr.rel (0) target = $region49
    $region48: #{tpu_custom_call.1} parent=1 // pred_region
      _
    $region49: #{tpu_custom_call.1} parent=1 // pred_fallthru
      _
    // Predicated region
    $region50: #{tpu_custom_call.1} parent=1 // pred_check
      _
    $region51: #{tpu_custom_call.1} parent=1 // pred_check_branch
      %54 = sbr.rel (0) target = $region53
    $region52: #{tpu_custom_call.1} parent=1 // pred_region
      _
    $region53: #{tpu_custom_call.1} parent=1 // pred_fallthru
      _
    // Predicated region
    $region54: #{tpu_custom_call.1} parent=1 // pred_check
      _
    $region55: #{tpu_custom_call.1} parent=1 // pred_check_branch
      %56 = sbr.rel (0) target = $region57
    $region56: #{tpu_custom_call.1} parent=1 // pred_region
      _
    $region57: #{tpu_custom_call.1} parent=1 // pred_fallthru
      _
    // Predicated region
    $region58: #{tpu_custom_call.1} parent=1 // pred_check
      _
    $region59: #{tpu_custom_call.1} parent=1 // pred_check_branch
      %58 = sbr.rel (0) target = $region61
    $region60: #{tpu_custom_call.1} parent=1 // pred_region
      _
    $region61: #{tpu_custom_call.1} parent=1 // pred_fallthru
      _
    // Predicated region
    $region62: #{tpu_custom_call.1} parent=1 // pred_check
      _
    $region63: #{tpu_custom_call.1} parent=1 // pred_check_branch
      %60 = sbr.rel (0) target = $region65
    $region64: #{tpu_custom_call.1} parent=1 // pred_region
      _
    $region65: #{tpu_custom_call.1} parent=1 // pred_fallthru
      _
    // Predicated region
    $region66: #{tpu_custom_call.1} parent=1 // pred_check
      _
    $region67: #{tpu_custom_call.1} parent=1 // pred_check_branch
      %62 = sbr.rel (0) target = $region69
    $region68: #{tpu_custom_call.1} parent=1 // pred_region
      _
    $region69: #{tpu_custom_call.1} parent=1 // pred_fallthru
      _
    // Predicated region
    $region70: #{tpu_custom_call.1} parent=1 // pred_check
      _
    $region71: #{tpu_custom_call.1} parent=1 // pred_check_branch
      %64 = sbr.rel (0) target = $region73
    $region72: #{tpu_custom_call.1} parent=1 // pred_region
      _
    $region73: #{tpu_custom_call.1} parent=1 // pred_fallthru
      _
    // Predicated region
    $region74: #{tpu_custom_call.1} parent=1 // pred_check
      _
    $region75: #{tpu_custom_call.1} parent=1 // pred_check_branch
      %66 = sbr.rel (0) target = $region77
    $region76: #{tpu_custom_call.1} parent=1 // pred_region
      _
    $region77: #{tpu_custom_call.1} parent=1 // pred_fallthru
      _
    // Predicated region
    $region78: #{tpu_custom_call.1} parent=1 // pred_check
      _
    $region79: #{tpu_custom_call.1} parent=1 // pred_check_branch
      %68 = sbr.rel (0) target = $region81
    $region80: #{tpu_custom_call.1} parent=1 // pred_region
      _
    $region81: #{tpu_custom_call.1} parent=1 // pred_fallthru
      _
    // Predicated region
    $region82: #{tpu_custom_call.1} parent=1 // pred_check
      _
    $region83: #{tpu_custom_call.1} parent=1 // pred_check_branch
      %70 = sbr.rel (0) target = $region85
    $region84: #{tpu_custom_call.1} parent=1 // pred_region
      _
    $region85: #{tpu_custom_call.1} parent=1 // pred_fallthru
      _
    %v72 = vld [vmem:[%s0] sm:$0xf]
    %v73 = vld [vmem:[%s0 + $0x4] sm:$0xf]
    %v74 = vld [vmem:[%s0 + $0x8] sm:$0xf]
    %v75 = vld [vmem:[%s0 + $0xc] sm:$0xf]
    %v76 = vld [vmem:[%s0 + $0x10] sm:$0xf]
    %v77 = vld [vmem:[%s0 + $0x14] sm:$0xf]
    %v78 = vld [vmem:[%s0 + $0x18] sm:$0xf]
    %v79 = vld [vmem:[%s0 + $0x1c] sm:$0xf]
    %v80 = vld [vmem:[%s0 + $0x20] sm:$0xf]
    %v81 = vld [vmem:[%s0 + $0x24] sm:$0xf]
    %v82 = vld [vmem:[%s0 + $0x28] sm:$0xf]
    %v83 = vld [vmem:[%s0 + $0x2c] sm:$0xf]
    %v84 = vld [vmem:[%s0 + $0x30] sm:$0xf]
    %v85 = vld [vmem:[%s0 + $0x34] sm:$0xf]
    %v86 = vld [vmem:[%s0 + $0x38] sm:$0xf]
    %v87 = vld [vmem:[%s0 + $0x3c] sm:$0xf]
    %v88 = vld [vmem:[%s1] sm:$0xf]
    %v89 = vld [vmem:[%s1 + $0x4] sm:$0xf]
    %v90 = vld [vmem:[%s1 + $0x8] sm:$0xf]
    %v91 = vld [vmem:[%s1 + $0xc] sm:$0xf]
    %v108 = vunpack.c.l.b16 %v72
    %v109 = vunpack.c.l.b16 %v73
    %v110 = vunpack.c.l.b16 %v74
    %v111 = vunpack.c.l.b16 %v75
    %v112 = vunpack.c.l.b16 %v76
    %v113 = vunpack.c.l.b16 %v77
    %v114 = vunpack.c.l.b16 %v78
    %v115 = vunpack.c.l.b16 %v79
    %v116 = vunpack.c.l.b16 %v80
    %v117 = vunpack.c.l.b16 %v81
    %v118 = vunpack.c.l.b16 %v82
    %v119 = vunpack.c.l.b16 %v83
    %v120 = vunpack.c.l.b16 %v84
    %v121 = vunpack.c.l.b16 %v85
    %v122 = vunpack.c.l.b16 %v86
    %v123 = vunpack.c.l.b16 %v87
    %v124 = vpack.c.b16 %v109, %v108
    %v125 = vpack.c.b16 %v111, %v110
    %v126 = vpack.c.b16 %v113, %v112
    %v127 = vpack.c.b16 %v115, %v114
    %v128 = vpack.c.b16 %v117, %v116
    %v129 = vpack.c.b16 %v119, %v118
    %v130 = vpack.c.b16 %v121, %v120
    %v131 = vpack.c.b16 %v123, %v122
    %v136 = vunpack.c.l.b16 %v88
    %v137 = vunpack.c.l.b16 %v89
    %v138 = vunpack.c.l.b16 %v90
    %v139 = vunpack.c.l.b16 %v91
    %v140 = vpack.c.b16 %v137, %v136
    %v141 = vpack.c.b16 %v139, %v138
    %vm144 = vcmask 261120
    %v146 = vsel %vm144, %v124, 0
    %v149 = vsel %vm144, %v125, 0
    %v152 = vsel %vm144, %v126, 0
    %v155 = vsel %vm144, %v127, 0
    %v158 = vsel %vm144, %v128, 0
    %v161 = vsel %vm144, %v129, 0
    %v164 = vsel %vm144, %v130, 0
    %v167 = vsel %vm144, %v131, 0
    %169 = vmatprep.subr.bf16.mxu0 0
    %170 = vmatpush1.bf16.msra.mxu0 0
    %171 = vmatprep.subr.bf16.mxu0 0
    %172 = vmatpush1.bf16.msra.mxu0 0
    %173 = vmatprep.subr.bf16.mxu0 0
    %174 = vmatpush1.bf16.msra.mxu0 0
    %175 = vmatprep.subr.bf16.mxu0 0
    %176 = vmatpush1.bf16.msra.mxu0 0
    %177 = vmatprep.subr.bf16.mxu0 0
    %178 = vmatpush1.bf16.msra.mxu0 0
    %179 = vmatprep.subr.bf16.mxu0 0
    %180 = vmatpush1.bf16.msra.mxu0 0
    %181 = vmatprep.subr.bf16.mxu0 0
    %182 = vmatpush1.bf16.msra.mxu0 %v141
    %183 = vmatprep.subr.bf16.mxu0 0
    %184 = vmatpush1.bf16.msra.mxu0 %v140
    %185 = vmatprep.subr.bf16.mxu0 0
    %186 = vmatpush2.bf16.msra.mxu0 0
    %187 = vmatprep.subr.bf16.mxu0 0
    %188 = vmatpush2.bf16.msra.mxu0 0
    %189 = vmatprep.subr.bf16.mxu0 0
    %190 = vmatpush2.bf16.msra.mxu0 0
    %191 = vmatprep.subr.bf16.mxu0 0
    %192 = vmatpush2.bf16.msra.mxu0 0
    %193 = vmatprep.subr.bf16.mxu0 0
    %194 = vmatpush2.bf16.msra.mxu0 0
    %195 = vmatprep.subr.bf16.mxu0 0
    %196 = vmatpush2.bf16.msra.mxu0 0
    %197 = vmatprep.subr.bf16.mxu0 0
    %198 = vmatpush2.bf16.msra.mxu0 0
    %199 = vmatprep.subr.bf16.mxu0 0
    %200 = vmatpush2.bf16.msra.mxu0 0
    %201 = vmatprep.mubr.bf16.mxu0 0
    %202 = vmatmul.mubr.bf16.gmra.mxu0 %v146
    %v203 = vpop.f32.mrf.mxu0
    %v204 = vadd.f32 0.0, %v203
    %v205 = vpop.f32.mrf.mxu0
    %v206 = vpop.f32.mrf.mxu0
    %v207 = vadd.f32 0.0, %v206
    %v208 = vpop.f32.mrf.mxu0
    %209 = vmatprep.mubr.bf16.mxu0 0
    %210 = vmatmul.mubr.bf16.gmra.mxu0 %v149
    %v211 = vpop.f32.mrf.mxu0
    %v212 = vadd.f32 0.0, %v211
    %v213 = vpop.f32.mrf.mxu0
    %v214 = vpop.f32.mrf.mxu0
    %v215 = vadd.f32 0.0, %v214
    %v216 = vpop.f32.mrf.mxu0
    %217 = vmatprep.mubr.bf16.mxu0 0
    %218 = vmatmul.mubr.bf16.gmra.mxu0 %v152
    %v219 = vpop.f32.mrf.mxu0
    %v220 = vadd.f32 0.0, %v219
    %v221 = vpop.f32.mrf.mxu0
    %v222 = vpop.f32.mrf.mxu0
    %v223 = vadd.f32 0.0, %v222
    %v224 = vpop.f32.mrf.mxu0
    %225 = vmatprep.mubr.bf16.mxu0 0
    %226 = vmatmul.mubr.bf16.gmra.mxu0 %v155
    %v227 = vpop.f32.mrf.mxu0
    %v228 = vadd.f32 0.0, %v227
    %v229 = vpop.f32.mrf.mxu0
    %v230 = vpop.f32.mrf.mxu0
    %v231 = vadd.f32 0.0, %v230
    %v232 = vpop.f32.mrf.mxu0
    %233 = vmatprep.mubr.bf16.mxu0 0
    %234 = vmatmul.mubr.bf16.gmra.mxu0 %v158
    %v235 = vpop.f32.mrf.mxu0
    %v236 = vadd.f32 0.0, %v235
    %v237 = vpop.f32.mrf.mxu0
    %v238 = vpop.f32.mrf.mxu0
    %v239 = vadd.f32 0.0, %v238
    %v240 = vpop.f32.mrf.mxu0
    %241 = vmatprep.mubr.bf16.mxu0 0
    %242 = vmatmul.mubr.bf16.gmra.mxu0 %v161
    %v243 = vpop.f32.mrf.mxu0
    %v244 = vadd.f32 0.0, %v243
    %v245 = vpop.f32.mrf.mxu0
    %v246 = vpop.f32.mrf.mxu0
    %v247 = vadd.f32 0.0, %v246
    %v248 = vpop.f32.mrf.mxu0
    %249 = vmatprep.mubr.bf16.mxu0 0
    %250 = vmatmul.mubr.bf16.gmra.mxu0 %v164
    %v251 = vpop.f32.mrf.mxu0
    %v252 = vadd.f32 0.0, %v251
    %v253 = vpop.f32.mrf.mxu0
    %v254 = vpop.f32.mrf.mxu0
    %v255 = vadd.f32 0.0, %v254
    %v256 = vpop.f32.mrf.mxu0
    %257 = vmatprep.mubr.bf16.mxu0 0
    %258 = vmatmul.mubr.bf16.gmra.mxu0 %v167
    %v259 = vpop.f32.mrf.mxu0
    %v260 = vadd.f32 0.0, %v259
    %v261 = vpop.f32.mrf.mxu0
    %v262 = vpop.f32.mrf.mxu0
    %v263 = vadd.f32 0.0, %v262
    %v264 = vpop.f32.mrf.mxu0
    %265 = vdwg.mxu0
    %vm266 = vcmask 64512
    %v267 = vsel %vm266, %v204, -inf
    %v268 = vsel %vm266, %v207, -inf
    %v269 = vsel %vm266, %v212, -inf
    %v270 = vmax.f32 %v267, %v269
    %v271 = vsel %vm266, %v215, -inf
    %v272 = vmax.f32 %v268, %v271
    %v273 = vsel %vm266, %v220, -inf
    %v274 = vmax.f32 %v270, %v273
    %v275 = vsel %vm266, %v223, -inf
    %v276 = vmax.f32 %v272, %v275
    %v277 = vsel %vm266, %v228, -inf
    %v278 = vmax.f32 %v274, %v277
    %v279 = vsel %vm266, %v231, -inf
    %v280 = vmax.f32 %v276, %v279
    %v281 = vmax.f32 %v278, %v280
    %v282 = vrot.slane %v281, 4
    %v283 = vmax.f32 %v281, %v282
    %v284 = vrot.slane %v283, 2
    %v285 = vmax.f32 %v283, %v284
    %v286 = vrot.slane %v285, 1
    %v287 = vmax.f32 %v285, %v286
    %v288 = vsel %vm266, %v236, -inf
    %v289 = vsel %vm266, %v239, -inf
    %v290 = vsel %vm266, %v244, -inf
    %v291 = vmax.f32 %v288, %v290
    %v292 = vsel %vm266, %v247, -inf
    %v293 = vmax.f32 %v289, %v292
    %v294 = vsel %vm266, %v252, -inf
    %v295 = vmax.f32 %v291, %v294
    %v296 = vsel %vm266, %v255, -inf
    %v297 = vmax.f32 %v293, %v296
    %v298 = vsel %vm266, %v260, -inf
    %v299 = vmax.f32 %v295, %v298
    %v300 = vsel %vm266, %v263, -inf
    %v301 = vmax.f32 %v297, %v300
    %v302 = vmax.f32 %v299, %v301
    %v303 = vrot.slane %v302, 4
    %v304 = vmax.f32 %v302, %v303
    %v305 = vrot.slane %v304, 2
    %v306 = vmax.f32 %v304, %v305
    %v307 = vrot.slane %v306, 1
    %v308 = vmax.f32 %v306, %v307
    %v309 = vsub.f32 %v204, %v287
    %v310 = vsub.f32 %v207, %v287
    %v311 = vsub.f32 %v212, %v287
    %v312 = vsub.f32 %v215, %v287
    %v313 = vsub.f32 %v220, %v287
    %v314 = vsub.f32 %v223, %v287
    %v315 = vsub.f32 %v228, %v287
    %v316 = vsub.f32 %v231, %v287
    %v317 = vsub.f32 %v236, %v308
    %v318 = vsub.f32 %v239, %v308
    %v319 = vsub.f32 %v244, %v308
    %v320 = vsub.f32 %v247, %v308
    %v321 = vsub.f32 %v252, %v308
    %v322 = vsub.f32 %v255, %v308
    %v323 = vsub.f32 %v260, %v308
    %v324 = vsub.f32 %v263, %v308
    %v325 = vmul.f32 %v309, 1.442695
    %v326 = vpow.pop %v325
    %v327 = vmul.f32 %v310, 1.442695
    %v328 = vpow.pop %v327
    %v329 = vmul.f32 %v311, 1.442695
    %v330 = vpow.pop %v329
    %v331 = vmul.f32 %v312, 1.442695
    %v332 = vpow.pop %v331
    %v333 = vmul.f32 %v313, 1.442695
    %v334 = vpow.pop %v333
    %v335 = vmul.f32 %v314, 1.442695
    %v336 = vpow.pop %v335
    %v337 = vmul.f32 %v315, 1.442695
    %v338 = vpow.pop %v337
    %v339 = vmul.f32 %v316, 1.442695
    %v340 = vpow.pop %v339
    %v341 = vmul.f32 %v317, 1.442695
    %v342 = vpow.pop %v341
    %v343 = vmul.f32 %v318, 1.442695
    %v344 = vpow.pop %v343
    %v345 = vmul.f32 %v319, 1.442695
    %v346 = vpow.pop %v345
    %v347 = vmul.f32 %v320, 1.442695
    %v348 = vpow.pop %v347
    %v349 = vmul.f32 %v321, 1.442695
    %v350 = vpow.pop %v349
    %v351 = vmul.f32 %v322, 1.442695
    %v352 = vpow.pop %v351
    %v353 = vmul.f32 %v323, 1.442695
    %v354 = vpow.pop %v353
    %v355 = vmul.f32 %v324, 1.442695
    %v356 = vpow.pop %v355
    %v357 = vsel %vm266, %v326, 0.0
    %v358 = vsel %vm266, %v328, 0.0
    %v359 = vadd.f32 %v357, %v358
    %v360 = vsel %vm266, %v330, 0.0
    %v361 = vadd.f32 %v359, %v360
    %v362 = vsel %vm266, %v332, 0.0
    %v363 = vadd.f32 %v361, %v362
    %v364 = vsel %vm266, %v334, 0.0
    %v365 = vadd.f32 %v363, %v364
    %v366 = vsel %vm266, %v336, 0.0
    %v367 = vadd.f32 %v365, %v366
    %v368 = vsel %vm266, %v338, 0.0
    %v369 = vadd.f32 %v367, %v368
    %v370 = vsel %vm266, %v340, 0.0
    %v371 = vadd.f32 %v369, %v370
    %v372 = vrot.slane %v371, 4
    %v373 = vadd.f32 %v371, %v372
    %v374 = vrot.slane %v373, 2
    %v375 = vadd.f32 %v373, %v374
    %v376 = vrot.slane %v375, 1
    %v377 = vadd.f32 %v375, %v376
    %v378 = vsel %vm266, %v342, 0.0
    %v379 = vsel %vm266, %v344, 0.0
    %v380 = vadd.f32 %v378, %v379
    %v381 = vsel %vm266, %v346, 0.0
    %v382 = vadd.f32 %v380, %v381
    %v383 = vsel %vm266, %v348, 0.0
    %v384 = vadd.f32 %v382, %v383
    %v385 = vsel %vm266, %v350, 0.0
    %v386 = vadd.f32 %v384, %v385
    %v387 = vsel %vm266, %v352, 0.0
    %v388 = vadd.f32 %v386, %v387
    %v389 = vsel %vm266, %v354, 0.0
    %v390 = vadd.f32 %v388, %v389
    %v391 = vsel %vm266, %v356, 0.0
    %v392 = vadd.f32 %v390, %v391
    %v393 = vrot.slane %v392, 4
    %v394 = vadd.f32 %v392, %v393
    %v395 = vrot.slane %v394, 2
    %v396 = vadd.f32 %v394, %v395
    %v397 = vrot.slane %v396, 1
    %v398 = vadd.f32 %v396, %v397
    %v399 = vrcp.pop %v377
    %v400 = vrcp.pop %v398
    %v401 = vmul.f32 %v326, %v399
    %v402 = vmul.f32 %v328, %v399
    %v403 = vmul.f32 %v330, %v399
    %v404 = vmul.f32 %v332, %v399
    %v405 = vmul.f32 %v334, %v399
    %v406 = vmul.f32 %v336, %v399
    %v407 = vmul.f32 %v338, %v399
    %v408 = vmul.f32 %v340, %v399
    %v409 = vmul.f32 %v342, %v400
    %v410 = vmul.f32 %v344, %v400
    %v411 = vmul.f32 %v346, %v400
    %v412 = vmul.f32 %v348, %v400
    %v413 = vmul.f32 %v350, %v400
    %v414 = vmul.f32 %v352, %v400
    %v415 = vmul.f32 %v354, %v400
    %v416 = vmul.f32 %v356, %v400
    %v417 = vpack.c.bf16 %v402, %v401
    %v418 = vpack.c.bf16 %v404, %v403
    %v419 = vpack.c.bf16 %v406, %v405
    %v420 = vpack.c.bf16 %v408, %v407
    %v421 = vpack.c.bf16 %v410, %v409
    %v422 = vpack.c.bf16 %v412, %v411
    %v423 = vpack.c.bf16 %v414, %v413
    %v424 = vpack.c.bf16 %v416, %v415
    %425 = vxpose.xlu0.c.b16.start [1/8] %v417, 128
    %426 = vxpose.xlu0.c.b16.cont [2/8] %v418, 128
    %427 = vxpose.xlu0.c.b16.cont [3/8] %v419, 128
    %428 = vxpose.xlu0.c.b16.cont [4/8] %v420, 128
    %429 = vxpose.xlu0.c.b16.cont [5/8] 0, 128
    %430 = vxpose.xlu0.c.b16.cont [6/8] 0, 128
    %431 = vxpose.xlu0.c.b16.cont [7/8] 0, 128
    %432 = vxpose.xlu0.c.b16.end [8/8] 0, 128
    %v433 = vpop.trf.xlu0
    %v434 = vpop.trf.xlu0
    %v435 = vpop.trf.xlu0
    %v436 = vpop.trf.xlu0
    %v437 = vpop.trf.xlu0
    %v438 = vpop.trf.xlu0
    %v439 = vpop.trf.xlu0
    %v440 = vpop.trf.xlu0
    %vm445 = vcmask 523264
    %v447 = vsel %vm445, %v433, 0
    %449 = vmatprep.subr.bf16.mxu0 0
    %450 = vmatpush1.bf16.msra.mxu0 0
    %451 = vmatprep.subr.bf16.mxu0 0
    %452 = vmatpush1.bf16.msra.mxu0 0
    %453 = vmatprep.subr.bf16.mxu0 0
    %454 = vmatpush1.bf16.msra.mxu0 0
    %455 = vmatprep.subr.bf16.mxu0 0
    %456 = vmatpush1.bf16.msra.mxu0 0
    %457 = vmatprep.subr.bf16.mxu0 0
    %458 = vmatpush1.bf16.msra.mxu0 %v127
    %459 = vmatprep.subr.bf16.mxu0 0
    %460 = vmatpush1.bf16.msra.mxu0 %v126
    %461 = vmatprep.subr.bf16.mxu0 0
    %462 = vmatpush1.bf16.msra.mxu0 %v125
    %463 = vmatprep.subr.bf16.mxu0 0
    %464 = vmatpush1.bf16.msra.mxu0 %v124
    %465 = vmatprep.subr.bf16.mxu0 0
    %466 = vmatpush2.bf16.msra.mxu0 0
    %467 = vmatprep.subr.bf16.mxu0 0
    %468 = vmatpush2.bf16.msra.mxu0 0
    %469 = vmatprep.subr.bf16.mxu0 0
    %470 = vmatpush2.bf16.msra.mxu0 0
    %471 = vmatprep.subr.bf16.mxu0 0
    %472 = vmatpush2.bf16.msra.mxu0 0
    %473 = vmatprep.subr.bf16.mxu0 0
    %474 = vmatpush2.bf16.msra.mxu0 0
    %475 = vmatprep.subr.bf16.mxu0 0
    %476 = vmatpush2.bf16.msra.mxu0 0
    %477 = vmatprep.subr.bf16.mxu0 0
    %478 = vmatpush2.bf16.msra.mxu0 0
    %479 = vmatprep.subr.bf16.mxu0 0
    %480 = vmatpush2.bf16.msra.mxu0 0
    %481 = vmatprep.mubr.bf16.mxu0 0
    %482 = vmatmul.mubr.bf16.gmra.mxu0 %v447
    %v483 = vpop.f32.mrf.mxu0
    %v484 = vadd.f32 0.0, %v483
    %v485 = vpop.f32.mrf.mxu0
    %v486 = vpop.f32.mrf.mxu0
    %v487 = vpop.f32.mrf.mxu0
    %488 = vdwg.mxu0
    %489 = vxpose.xlu0.c.b16.start [1/8] %v421, 128
    %490 = vxpose.xlu0.c.b16.cont [2/8] %v422, 128
    %491 = vxpose.xlu0.c.b16.cont [3/8] %v423, 128
    %492 = vxpose.xlu0.c.b16.cont [4/8] %v424, 128
    %493 = vxpose.xlu0.c.b16.cont [5/8] 0, 128
    %494 = vxpose.xlu0.c.b16.cont [6/8] 0, 128
    %495 = vxpose.xlu0.c.b16.cont [7/8] 0, 128
    %496 = vxpose.xlu0.c.b16.end [8/8] 0, 128
    %v497 = vpop.trf.xlu0
    %v498 = vpop.trf.xlu0
    %v499 = vpop.trf.xlu0
    %v500 = vpop.trf.xlu0
    %v501 = vpop.trf.xlu0
    %v502 = vpop.trf.xlu0
    %v503 = vpop.trf.xlu0
    %v504 = vpop.trf.xlu0
    %v510 = vsel %vm445, %v497, 0
    %512 = vmatprep.subr.bf16.mxu0 0
    %513 = vmatpush1.bf16.msra.mxu0 0
    %514 = vmatprep.subr.bf16.mxu0 0
    %515 = vmatpush1.bf16.msra.mxu0 0
    %516 = vmatprep.subr.bf16.mxu0 0
    %517 = vmatpush1.bf16.msra.mxu0 0
    %518 = vmatprep.subr.bf16.mxu0 0
    %519 = vmatpush1.bf16.msra.mxu0 0
    %520 = vmatprep.subr.bf16.mxu0 0
    %521 = vmatpush1.bf16.msra.mxu0 %v131
    %522 = vmatprep.subr.bf16.mxu0 0
    %523 = vmatpush1.bf16.msra.mxu0 %v130
    %524 = vmatprep.subr.bf16.mxu0 0
    %525 = vmatpush1.bf16.msra.mxu0 %v129
    %526 = vmatprep.subr.bf16.mxu0 0
    %527 = vmatpush1.bf16.msra.mxu0 %v128
    %528 = vmatprep.subr.bf16.mxu0 0
    %529 = vmatpush2.bf16.msra.mxu0 0
    %530 = vmatprep.subr.bf16.mxu0 0
    %531 = vmatpush2.bf16.msra.mxu0 0
    %532 = vmatprep.subr.bf16.mxu0 0
    %533 = vmatpush2.bf16.msra.mxu0 0
    %534 = vmatprep.subr.bf16.mxu0 0
    %535 = vmatpush2.bf16.msra.mxu0 0
    %536 = vmatprep.subr.bf16.mxu0 0
    %537 = vmatpush2.bf16.msra.mxu0 0
    %538 = vmatprep.subr.bf16.mxu0 0
    %539 = vmatpush2.bf16.msra.mxu0 0
    %540 = vmatprep.subr.bf16.mxu0 0
    %541 = vmatpush2.bf16.msra.mxu0 0
    %542 = vmatprep.subr.bf16.mxu0 0
    %543 = vmatpush2.bf16.msra.mxu0 0
    %544 = vmatprep.mubr.bf16.mxu0 0
    %545 = vmatmul.mubr.bf16.gmra.mxu0 %v510
    %v546 = vpop.f32.mrf.mxu0
    %v547 = vadd.f32 0.0, %v546
    %v548 = vpop.f32.mrf.mxu0
    %v549 = vpop.f32.mrf.mxu0
    %v550 = vpop.f32.mrf.mxu0
    %551 = vdwg.mxu0
    %v552 = vld [vmem:[%s2] sm:$0x1]
    %v553 = vld [vmem:[%s3] sm:$0x1]
    %v554 = vsel %vm144, %v484, 0.0
    %555 = vadd.xlane.f32.xlu0 %v554
    %v556 = vpop.xlane.xlu0 %555
    %v557 = vsel %vm144, %v547, 0.0
    %558 = vadd.xlane.f32.xlu0 %v557
    %v559 = vpop.xlane.xlu0 %558
    %v560 = vrcp.pop 32.0
    %v561 = vmul.f32 %v556, %v560
    %v562 = vmul.f32 %v559, %v560
    %v563 = vsub.f32 %v484, %v561
    %v564 = vsub.f32 %v547, %v562
    %v565 = vmul.f32 %v563, %v563
    %v566 = vmul.f32 %v564, %v564
    %v567 = vsel %vm144, %v565, 0.0
    %568 = vadd.xlane.f32.xlu0 %v567
    %v569 = vpop.xlane.xlu0 %568
    %v570 = vsel %vm144, %v566, 0.0
    %571 = vadd.xlane.f32.xlu0 %v570
    %v572 = vpop.xlane.xlu0 %571
    %v573 = vmul.f32 %v569, %v560
    %v574 = vmul.f32 %v572, %v560
    %v575 = vadd.f32 %v573, 1e-05
    %v576 = vadd.f32 %v574, 1e-05
    %v577 = vrsqrt.pop %v575
    %v578 = vrsqrt.pop %v576
    %v579 = vmul.f32 %v563, %v577
    %v580 = vmul.f32 %v564, %v578
    %v582 = vlaneseq
    %v583 = vshrl.u32 %v582, 7
    %v584 = vsub.s32 0, %v583
    %v585 = vrot.slane %v552, %v584
    %v587 = vmul.f32 %v579, %v585
    %v588 = vmul.f32 %v580, %v585
    %v590 = vlaneseq
    %v591 = vshrl.u32 %v590, 7
    %v592 = vsub.s32 0, %v591
    %v593 = vrot.slane %v553, %v592
    %v595 = vadd.f32 %v587, %v593
    %v596 = vadd.f32 %v588, %v593
    %v597 = vpack.c.bf16 %v595, %v595
    %v598 = vpack.c.bf16 %v596, %v596
    %v599 = vld [vmem:[%s4] sm:$0xf]
    %v600 = vld [vmem:[%s4 + $0x4] sm:$0xf]
    %v601 = vld [vmem:[%s4 + $0x8] sm:$0xf]
    %v602 = vld [vmem:[%s4 + $0xc] sm:$0xf]
    %v603 = vld [vmem:[%s5] sm:$0x1]
    %v605 = vlaneseq
    %v606 = vshrl.u32 %v605, 7
    %v607 = vsub.s32 0, %v606
    %v608 = vrot.slane %v603, %v607
    %v612 = vunpack.c.l.b16 %v597
    %v613 = vunpack.c.l.b16 %v598
    %v614 = vpack.c.b16 %v613, %v612
    %v619 = vunpack.c.l.b16 %v599
    %v620 = vunpack.c.l.b16 %v600
    %v621 = vunpack.c.l.b16 %v601
    %v622 = vunpack.c.l.b16 %v602
    %v623 = vpack.c.b16 %v620, %v619
    %v624 = vpack.c.b16 %v622, %v621
    %v628 = vsel %vm144, %v614, 0
    %630 = vmatprep.subr.bf16.mxu0 0
    %631 = vmatpush1.bf16.msra.mxu0 0
    %632 = vmatprep.subr.bf16.mxu0 0
    %633 = vmatpush1.bf16.msra.mxu0 0
    %634 = vmatprep.subr.bf16.mxu0 0
    %635 = vmatpush1.bf16.msra.mxu0 0
    %636 = vmatprep.subr.bf16.mxu0 0
    %637 = vmatpush1.bf16.msra.mxu0 0
    %638 = vmatprep.subr.bf16.mxu0 0
    %639 = vmatpush1.bf16.msra.mxu0 0
    %640 = vmatprep.subr.bf16.mxu0 0
    %641 = vmatpush1.bf16.msra.mxu0 0
    %642 = vmatprep.subr.bf16.mxu0 0
    %643 = vmatpush1.bf16.msra.mxu0 %v624
    %644 = vmatprep.subr.bf16.mxu0 0
    %645 = vmatpush1.bf16.msra.mxu0 %v623
    %646 = vmatprep.subr.bf16.mxu0 0
    %647 = vmatpush2.bf16.msra.mxu0 0
    %648 = vmatprep.subr.bf16.mxu0 0
    %649 = vmatpush2.bf16.msra.mxu0 0
    %650 = vmatprep.subr.bf16.mxu0 0
    %651 = vmatpush2.bf16.msra.mxu0 0
    %652 = vmatprep.subr.bf16.mxu0 0
    %653 = vmatpush2.bf16.msra.mxu0 0
    %654 = vmatprep.subr.bf16.mxu0 0
    %655 = vmatpush2.bf16.msra.mxu0 0
    %656 = vmatprep.subr.bf16.mxu0 0
    %657 = vmatpush2.bf16.msra.mxu0 0
    %658 = vmatprep.subr.bf16.mxu0 0
    %659 = vmatpush2.bf16.msra.mxu0 0
    %660 = vmatprep.subr.bf16.mxu0 0
    %661 = vmatpush2.bf16.msra.mxu0 0
    %662 = vmatprep.mubr.bf16.mxu0 0
    %663 = vmatmul.mubr.bf16.gmra.mxu0 %v628
    %v664 = vpop.f32.mrf.mxu0
    %v665 = vadd.f32 %v608, %v664
    %v666 = vpop.f32.mrf.mxu0
    %v667 = vpop.f32.mrf.mxu0
    %v668 = vadd.f32 %v608, %v667
    %v669 = vpop.f32.mrf.mxu0
    %670 = vdwg.mxu0
    %v671 = vld [vmem:[%s6] sm:$0xf]
    %v672 = vld [vmem:[%s6 + $0x4] sm:$0xf]
    %v673 = vld [vmem:[%s6 + $0x8] sm:$0xf]
    %v674 = vld [vmem:[%s6 + $0xc] sm:$0xf]
    %v675 = vld [vmem:[%s7] sm:$0x1]
    %v677 = vlaneseq
    %v678 = vshrl.u32 %v677, 7
    %v679 = vsub.s32 0, %v678
    %v680 = vrot.slane %v675, %v679
    %v686 = vunpack.c.l.b16 %v671
    %v687 = vunpack.c.l.b16 %v672
    %v688 = vunpack.c.l.b16 %v673
    %v689 = vunpack.c.l.b16 %v674
    %v690 = vpack.c.b16 %v687, %v686
    %v691 = vpack.c.b16 %v689, %v688
    %694 = vmatprep.subr.bf16.mxu0 0
    %695 = vmatpush1.bf16.msra.mxu0 0
    %696 = vmatprep.subr.bf16.mxu0 0
    %697 = vmatpush1.bf16.msra.mxu0 0
    %698 = vmatprep.subr.bf16.mxu0 0
    %699 = vmatpush1.bf16.msra.mxu0 0
    %700 = vmatprep.subr.bf16.mxu0 0
    %701 = vmatpush1.bf16.msra.mxu0 0
    %702 = vmatprep.subr.bf16.mxu0 0
    %703 = vmatpush1.bf16.msra.mxu0 0
    %704 = vmatprep.subr.bf16.mxu0 0
    %705 = vmatpush1.bf16.msra.mxu0 0
    %706 = vmatprep.subr.bf16.mxu0 0
    %707 = vmatpush1.bf16.msra.mxu0 %v691
    %708 = vmatprep.subr.bf16.mxu0 0
    %709 = vmatpush1.bf16.msra.mxu0 %v690
    %710 = vmatprep.subr.bf16.mxu0 0
    %711 = vmatpush2.bf16.msra.mxu0 0
    %712 = vmatprep.subr.bf16.mxu0 0
    %713 = vmatpush2.bf16.msra.mxu0 0
    %714 = vmatprep.subr.bf16.mxu0 0
    %715 = vmatpush2.bf16.msra.mxu0 0
    %716 = vmatprep.subr.bf16.mxu0 0
    %717 = vmatpush2.bf16.msra.mxu0 0
    %718 = vmatprep.subr.bf16.mxu0 0
    %719 = vmatpush2.bf16.msra.mxu0 0
    %720 = vmatprep.subr.bf16.mxu0 0
    %721 = vmatpush2.bf16.msra.mxu0 0
    %722 = vmatprep.subr.bf16.mxu0 0
    %723 = vmatpush2.bf16.msra.mxu0 0
    %724 = vmatprep.subr.bf16.mxu0 0
    %725 = vmatpush2.bf16.msra.mxu0 0
    %726 = vmatprep.mubr.bf16.mxu0 0
    %727 = vmatmul.mubr.bf16.gmra.mxu0 %v628
    %v728 = vpop.f32.mrf.mxu0
    %v729 = vadd.f32 %v680, %v728
    %v730 = vpop.f32.mrf.mxu0
    %v731 = vpop.f32.mrf.mxu0
    %v732 = vadd.f32 %v680, %v731
    %v733 = vpop.f32.mrf.mxu0
    %734 = vdwg.mxu0
    %v735 = vld [vmem:[%s8] sm:$0xf]
    %v736 = vld [vmem:[%s8 + $0x4] sm:$0xf]
    %v737 = vld [vmem:[%s8 + $0x8] sm:$0xf]
    %v738 = vld [vmem:[%s8 + $0xc] sm:$0xf]
    %v739 = vld [vmem:[%s9] sm:$0x1]
    %v741 = vlaneseq
    %v742 = vshrl.u32 %v741, 7
    %v743 = vsub.s32 0, %v742
    %v744 = vrot.slane %v739, %v743
    %v750 = vunpack.c.l.b16 %v735
    %v751 = vunpack.c.l.b16 %v736
    %v752 = vunpack.c.l.b16 %v737
    %v753 = vunpack.c.l.b16 %v738
    %v754 = vpack.c.b16 %v751, %v750
    %v755 = vpack.c.b16 %v753, %v752
    %758 = vmatprep.subr.bf16.mxu0 0
    %759 = vmatpush1.bf16.msra.mxu0 0
    %760 = vmatprep.subr.bf16.mxu0 0
    %761 = vmatpush1.bf16.msra.mxu0 0
    %762 = vmatprep.subr.bf16.mxu0 0
    %763 = vmatpush1.bf16.msra.mxu0 0
    %764 = vmatprep.subr.bf16.mxu0 0
    %765 = vmatpush1.bf16.msra.mxu0 0
    %766 = vmatprep.subr.bf16.mxu0 0
    %767 = vmatpush1.bf16.msra.mxu0 0
    %768 = vmatprep.subr.bf16.mxu0 0
    %769 = vmatpush1.bf16.msra.mxu0 0
    %770 = vmatprep.subr.bf16.mxu0 0
    %771 = vmatpush1.bf16.msra.mxu0 %v755
    %772 = vmatprep.subr.bf16.mxu0 0
    %773 = vmatpush1.bf16.msra.mxu0 %v754
    %774 = vmatprep.subr.bf16.mxu0 0
    %775 = vmatpush2.bf16.msra.mxu0 0
    %776 = vmatprep.subr.bf16.mxu0 0
    %777 = vmatpush2.bf16.msra.mxu0 0
    %778 = vmatprep.subr.bf16.mxu0 0
    %779 = vmatpush2.bf16.msra.mxu0 0
    %780 = vmatprep.subr.bf16.mxu0 0
    %781 = vmatpush2.bf16.msra.mxu0 0
    %782 = vmatprep.subr.bf16.mxu0 0
    %783 = vmatpush2.bf16.msra.mxu0 0
    %784 = vmatprep.subr.bf16.mxu0 0
    %785 = vmatpush2.bf16.msra.mxu0 0
    %786 = vmatprep.subr.bf16.mxu0 0
    %787 = vmatpush2.bf16.msra.mxu0 0
    %788 = vmatprep.subr.bf16.mxu0 0
    %789 = vmatpush2.bf16.msra.mxu0 0
    %790 = vmatprep.mubr.bf16.mxu0 0
    %791 = vmatmul.mubr.bf16.gmra.mxu0 %v628
    %v792 = vpop.f32.mrf.mxu0
    %v793 = vadd.f32 %v744, %v792
    %v794 = vpop.f32.mrf.mxu0
    %v795 = vpop.f32.mrf.mxu0
    %v796 = vadd.f32 %v744, %v795
    %v797 = vpop.f32.mrf.mxu0
    %798 = vdwg.mxu0
    %v799 = vld [vmem:[%s20] sm:$0xf]
    %v800 = vld [vmem:[%s20 + $0x4] sm:$0xf]
    %v801 = vld [vmem:[%s20 + $0x8] sm:$0xf]
    %v802 = vld [vmem:[%s20 + $0xc] sm:$0xf]
    %v803 = vpack.c.bf16 %v665, %v665
    %v804 = vpack.c.bf16 %v668, %v668
    %v805 = vmul.bf16 %v803, %v799
    %v806 = vmul.bf16 %v803, %v800
    %v807 = vmul.bf16 %v803, %v801
    %v808 = vmul.bf16 %v803, %v802
    %v809 = vmul.bf16 %v804, %v799
    %v810 = vmul.bf16 %v804, %v800
    %v811 = vmul.bf16 %v804, %v801
    %v812 = vmul.bf16 %v804, %v802
    %v813 = vpack.c.bf16 %v729, %v729
    %v814 = vpack.c.bf16 %v732, %v732
    %v819 = vunpack.c.l.b16 %v805
    %v820 = vunpack.c.l.b16 %v806
    %v821 = vunpack.c.l.b16 %v807
    %v822 = vunpack.c.l.b16 %v808
    %v823 = vpack.c.b16 %v820, %v819
    %v824 = vpack.c.b16 %v822, %v821
    %v826 = vsel %vm144, %v823, 0
    %v829 = vsel %vm144, %v824, 0
    %v832 = vsel %vm144, %v813, 0
    %834 = vmatprep.subr.bf16.mxu0 0
    %835 = vmatpush1.bf16.xpose.msra.mxu0 0
    %836 = vmatprep.subr.bf16.mxu0 0
    %837 = vmatpush1.bf16.xpose.msra.mxu0 0
    %838 = vmatprep.subr.bf16.mxu0 0
    %839 = vmatpush1.bf16.xpose.msra.mxu0 0
    %840 = vmatprep.subr.bf16.mxu0 0
    %841 = vmatpush1.bf16.xpose.msra.mxu0 0
    %842 = vmatprep.subr.bf16.mxu0 0
    %843 = vmatpush1.bf16.xpose.msra.mxu0 0
    %844 = vmatprep.subr.bf16.mxu0 0
    %845 = vmatpush1.bf16.xpose.msra.mxu0 0
    %846 = vmatprep.subr.bf16.mxu0 0
    %847 = vmatpush1.bf16.xpose.msra.mxu0 0
    %848 = vmatprep.subr.bf16.mxu0 0
    %849 = vmatpush1.bf16.xpose.msra.mxu0 %v832
    %850 = vmatprep.subr.bf16.mxu0 0
    %851 = vmatpush2.bf16.xpose.msra.mxu0 0
    %852 = vmatprep.subr.bf16.mxu0 0
    %853 = vmatpush2.bf16.xpose.msra.mxu0 0
    %854 = vmatprep.subr.bf16.mxu0 0
    %855 = vmatpush2.bf16.xpose.msra.mxu0 0
    %856 = vmatprep.subr.bf16.mxu0 0
    %857 = vmatpush2.bf16.xpose.msra.mxu0 0
    %858 = vmatprep.subr.bf16.mxu0 0
    %859 = vmatpush2.bf16.xpose.msra.mxu0 0
    %860 = vmatprep.subr.bf16.mxu0 0
    %861 = vmatpush2.bf16.xpose.msra.mxu0 0
    %862 = vmatprep.subr.bf16.mxu0 0
    %863 = vmatpush2.bf16.xpose.msra.mxu0 0
    %864 = vmatprep.subr.bf16.mxu0 0
    %865 = vmatpush2.bf16.xpose.msra.mxu0 0
    %866 = vmatprep.mubr.bf16.mxu0 0
    %867 = vmatmul.mubr.bf16.gmra.mxu0 %v826
    %v868 = vpop.f32.mrf.mxu0
    %v869 = vadd.f32 0.0, %v868
    %v870 = vpop.f32.mrf.mxu0
    %v871 = vpop.f32.mrf.mxu0
    %v872 = vadd.f32 0.0, %v871
    %v873 = vpop.f32.mrf.mxu0
    %874 = vmatprep.mubr.bf16.mxu0 0
    %875 = vmatmul.mubr.bf16.gmra.mxu0 %v829
    %v876 = vpop.f32.mrf.mxu0
    %v877 = vadd.f32 0.0, %v876
    %v878 = vpop.f32.mrf.mxu0
    %v879 = vpop.f32.mrf.mxu0
    %v880 = vadd.f32 0.0, %v879
    %v881 = vpop.f32.mrf.mxu0
    %882 = vdwg.mxu0
    %v887 = vunpack.c.l.b16 %v809
    %v888 = vunpack.c.l.b16 %v810
    %v889 = vunpack.c.l.b16 %v811
    %v890 = vunpack.c.l.b16 %v812
    %v891 = vpack.c.b16 %v888, %v887
    %v892 = vpack.c.b16 %v890, %v889
    %v894 = vsel %vm144, %v891, 0
    %v897 = vsel %vm144, %v892, 0
    %v900 = vsel %vm144, %v814, 0
    %902 = vmatprep.subr.bf16.mxu0 0
    %903 = vmatpush1.bf16.xpose.msra.mxu0 0
    %904 = vmatprep.subr.bf16.mxu0 0
    %905 = vmatpush1.bf16.xpose.msra.mxu0 0
    %906 = vmatprep.subr.bf16.mxu0 0
    %907 = vmatpush1.bf16.xpose.msra.mxu0 0
    %908 = vmatprep.subr.bf16.mxu0 0
    %909 = vmatpush1.bf16.xpose.msra.mxu0 0
    %910 = vmatprep.subr.bf16.mxu0 0
    %911 = vmatpush1.bf16.xpose.msra.mxu0 0
    %912 = vmatprep.subr.bf16.mxu0 0
    %913 = vmatpush1.bf16.xpose.msra.mxu0 0
    %914 = vmatprep.subr.bf16.mxu0 0
    %915 = vmatpush1.bf16.xpose.msra.mxu0 0
    %916 = vmatprep.subr.bf16.mxu0 0
    %917 = vmatpush1.bf16.xpose.msra.mxu0 %v900
    %918 = vmatprep.subr.bf16.mxu0 0
    %919 = vmatpush2.bf16.xpose.msra.mxu0 0
    %920 = vmatprep.subr.bf16.mxu0 0
    %921 = vmatpush2.bf16.xpose.msra.mxu0 0
    %922 = vmatprep.subr.bf16.mxu0 0
    %923 = vmatpush2.bf16.xpose.msra.mxu0 0
    %924 = vmatprep.subr.bf16.mxu0 0
    %925 = vmatpush2.bf16.xpose.msra.mxu0 0
    %926 = vmatprep.subr.bf16.mxu0 0
    %927 = vmatpush2.bf16.xpose.msra.mxu0 0
    %928 = vmatprep.subr.bf16.mxu0 0
    %929 = vmatpush2.bf16.xpose.msra.mxu0 0
    %930 = vmatprep.subr.bf16.mxu0 0
    %931 = vmatpush2.bf16.xpose.msra.mxu0 0
    %932 = vmatprep.subr.bf16.mxu0 0
    %933 = vmatpush2.bf16.xpose.msra.mxu0 0
    %934 = vmatprep.mubr.bf16.mxu0 0
    %935 = vmatmul.mubr.bf16.gmra.mxu0 %v894
    %v936 = vpop.f32.mrf.mxu0
    %v937 = vadd.f32 0.0, %v936
    %v938 = vpop.f32.mrf.mxu0
    %v939 = vpop.f32.mrf.mxu0
    %v940 = vadd.f32 0.0, %v939
    %v941 = vpop.f32.mrf.mxu0
    %942 = vmatprep.mubr.bf16.mxu0 0
    %943 = vmatmul.mubr.bf16.gmra.mxu0 %v897
    %v944 = vpop.f32.mrf.mxu0
    %v945 = vadd.f32 0.0, %v944
    %v946 = vpop.f32.mrf.mxu0
    %v947 = vpop.f32.mrf.mxu0
    %v948 = vadd.f32 0.0, %v947
    %v949 = vpop.f32.mrf.mxu0
    %950 = vdwg.mxu0
    %v951 = vmul.f32 %v869, 0.35355338
    %v952 = vmul.f32 %v872, 0.35355338
    %v953 = vmul.f32 %v877, 0.35355338
    %v954 = vmul.f32 %v880, 0.35355338
    %v955 = vmul.f32 %v937, 0.35355338
    %v956 = vmul.f32 %v940, 0.35355338
    %v957 = vmul.f32 %v945, 0.35355338
    %v958 = vmul.f32 %v948, 0.35355338
    %v959 = vsel %vm266, %v951, -inf
    %960 = vmax.xlane.f32.xlu0 %v959
    %v961 = vpop.xlane.xlu0 %960
    %v962 = vsel %vm266, %v952, -inf
    %963 = vmax.xlane.f32.xlu0 %v962
    %v964 = vpop.xlane.xlu0 %963
    %v965 = vsel %vm266, %v953, -inf
    %966 = vmax.xlane.f32.xlu0 %v965
    %v967 = vpop.xlane.xlu0 %966
    %v968 = vsel %vm266, %v954, -inf
    %969 = vmax.xlane.f32.xlu0 %v968
    %v970 = vpop.xlane.xlu0 %969
    %v971 = vsel %vm266, %v955, -inf
    %972 = vmax.xlane.f32.xlu0 %v971
    %v973 = vpop.xlane.xlu0 %972
    %v974 = vsel %vm266, %v956, -inf
    %975 = vmax.xlane.f32.xlu0 %v974
    %v976 = vpop.xlane.xlu0 %975
    %v977 = vsel %vm266, %v957, -inf
    %978 = vmax.xlane.f32.xlu0 %v977
    %v979 = vpop.xlane.xlu0 %978
    %v980 = vsel %vm266, %v958, -inf
    %981 = vmax.xlane.f32.xlu0 %v980
    %v982 = vpop.xlane.xlu0 %981
    %v983 = vsub.f32 %v951, %v961
    %v984 = vsub.f32 %v952, %v964
    %v985 = vsub.f32 %v953, %v967
    %v986 = vsub.f32 %v954, %v970
    %v987 = vsub.f32 %v955, %v973
    %v988 = vsub.f32 %v956, %v976
    %v989 = vsub.f32 %v957, %v979
    %v990 = vsub.f32 %v958, %v982
    %v991 = vmul.f32 %v983, 1.442695
    %v992 = vpow.pop %v991
    %v993 = vmul.f32 %v984, 1.442695
    %v994 = vpow.pop %v993
    %v995 = vmul.f32 %v985, 1.442695
    %v996 = vpow.pop %v995
    %v997 = vmul.f32 %v986, 1.442695
    %v998 = vpow.pop %v997
    %v999 = vmul.f32 %v987, 1.442695
    %v1000 = vpow.pop %v999
    %v1001 = vmul.f32 %v988, 1.442695
    %v1002 = vpow.pop %v1001
    %v1003 = vmul.f32 %v989, 1.442695
    %v1004 = vpow.pop %v1003
    %v1005 = vmul.f32 %v990, 1.442695
    %v1006 = vpow.pop %v1005
    %v1007 = vsel %vm266, %v992, 0.0
    %1008 = vadd.xlane.f32.xlu0 %v1007
    %v1009 = vpop.xlane.xlu0 %1008
    %v1010 = vsel %vm266, %v994, 0.0
    %1011 = vadd.xlane.f32.xlu0 %v1010
    %v1012 = vpop.xlane.xlu0 %1011
    %v1013 = vsel %vm266, %v996, 0.0
    %1014 = vadd.xlane.f32.xlu0 %v1013
    %v1015 = vpop.xlane.xlu0 %1014
    %v1016 = vsel %vm266, %v998, 0.0
    %1017 = vadd.xlane.f32.xlu0 %v1016
    %v1018 = vpop.xlane.xlu0 %1017
    %v1019 = vsel %vm266, %v1000, 0.0
    %1020 = vadd.xlane.f32.xlu0 %v1019
    %v1021 = vpop.xlane.xlu0 %1020
    %v1022 = vsel %vm266, %v1002, 0.0
    %1023 = vadd.xlane.f32.xlu0 %v1022
    %v1024 = vpop.xlane.xlu0 %1023
    %v1025 = vsel %vm266, %v1004, 0.0
    %1026 = vadd.xlane.f32.xlu0 %v1025
    %v1027 = vpop.xlane.xlu0 %1026
    %v1028 = vsel %vm266, %v1006, 0.0
    %1029 = vadd.xlane.f32.xlu0 %v1028
    %v1030 = vpop.xlane.xlu0 %1029
    %v1031 = vrcp.pop %v1009
    %v1032 = vrcp.pop %v1012
    %v1033 = vrcp.pop %v1015
    %v1034 = vrcp.pop %v1018
    %v1035 = vrcp.pop %v1021
    %v1036 = vrcp.pop %v1024
    %v1037 = vrcp.pop %v1027
    %v1038 = vrcp.pop %v1030
    %v1039 = vmul.f32 %v992, %v1031
    %v1040 = vmul.f32 %v994, %v1032
    %v1041 = vmul.f32 %v996, %v1033
    %v1042 = vmul.f32 %v998, %v1034
    %v1043 = vmul.f32 %v1000, %v1035
    %v1044 = vmul.f32 %v1002, %v1036
    %v1045 = vmul.f32 %v1004, %v1037
    %v1046 = vmul.f32 %v1006, %v1038
    %v1047 = vpack.c.bf16 %v1040, %v1039
    %v1048 = vpack.c.bf16 %v1042, %v1041
    %v1049 = vpack.c.bf16 %v1044, %v1043
    %v1050 = vpack.c.bf16 %v1046, %v1045
    %v1051 = vpack.c.bf16 %v793, %v793
    %v1052 = vpack.c.bf16 %v796, %v796
    %v1054 = vsel %vm266, %v1047, 0
    %v1057 = vsel %vm266, %v1048, 0
    %vm1059 = vcmask 1043456
    %v1061 = vsel %vm1059, %v1051, 0
    %1063 = vmatprep.subr.bf16.mxu0 0
    %1064 = vmatpush1.bf16.msra.mxu0 0
    %1065 = vmatprep.subr.bf16.mxu0 0
    %1066 = vmatpush1.bf16.msra.mxu0 0
    %1067 = vmatprep.subr.bf16.mxu0 0
    %1068 = vmatpush1.bf16.msra.mxu0 0
    %1069 = vmatprep.subr.bf16.mxu0 0
    %1070 = vmatpush1.bf16.msra.mxu0 0
    %1071 = vmatprep.subr.bf16.mxu0 0
    %1072 = vmatpush1.bf16.msra.mxu0 0
    %1073 = vmatprep.subr.bf16.mxu0 0
    %1074 = vmatpush1.bf16.msra.mxu0 0
    %1075 = vmatprep.subr.bf16.mxu0 0
    %1076 = vmatpush1.bf16.msra.mxu0 0
    %1077 = vmatprep.subr.bf16.mxu0 0
    %1078 = vmatpush1.bf16.msra.mxu0 %v1061
    %1079 = vmatprep.subr.bf16.mxu0 0
    %1080 = vmatpush2.bf16.msra.mxu0 0
    %1081 = vmatprep.subr.bf16.mxu0 0
    %1082 = vmatpush2.bf16.msra.mxu0 0
    %1083 = vmatprep.subr.bf16.mxu0 0
    %1084 = vmatpush2.bf16.msra.mxu0 0
    %1085 = vmatprep.subr.bf16.mxu0 0
    %1086 = vmatpush2.bf16.msra.mxu0 0
    %1087 = vmatprep.subr.bf16.mxu0 0
    %1088 = vmatpush2.bf16.msra.mxu0 0
    %1089 = vmatprep.subr.bf16.mxu0 0
    %1090 = vmatpush2.bf16.msra.mxu0 0
    %1091 = vmatprep.subr.bf16.mxu0 0
    %1092 = vmatpush2.bf16.msra.mxu0 0
    %1093 = vmatprep.subr.bf16.mxu0 0
    %1094 = vmatpush2.bf16.msra.mxu0 0
    %1095 = vmatprep.mubr.bf16.mxu0 0
    %1096 = vmatmul.mubr.bf16.gmra.mxu0 %v1054
    %v1097 = vpop.f32.mrf.mxu0
    %v1098 = vadd.f32 0.0, %v1097
    %v1099 = vpop.f32.mrf.mxu0
    %v1100 = vpop.f32.mrf.mxu0
    %v1101 = vadd.f32 0.0, %v1100
    %v1102 = vpop.f32.mrf.mxu0
    %1103 = vmatprep.mubr.bf16.mxu0 0
    %1104 = vmatmul.mubr.bf16.gmra.mxu0 %v1057
    %v1105 = vpop.f32.mrf.mxu0
    %v1106 = vadd.f32 0.0, %v1105
    %v1107 = vpop.f32.mrf.mxu0
    %v1108 = vpop.f32.mrf.mxu0
    %v1109 = vadd.f32 0.0, %v1108
    %v1110 = vpop.f32.mrf.mxu0
    %1111 = vdwg.mxu0
    %v1113 = vsel %vm266, %v1049, 0
    %v1116 = vsel %vm266, %v1050, 0
    %v1119 = vsel %vm1059, %v1052, 0
    %1121 = vmatprep.subr.bf16.mxu0 0
    %1122 = vmatpush1.bf16.msra.mxu0 0
    %1123 = vmatprep.subr.bf16.mxu0 0
    %1124 = vmatpush1.bf16.msra.mxu0 0
    %1125 = vmatprep.subr.bf16.mxu0 0
    %1126 = vmatpush1.bf16.msra.mxu0 0
    %1127 = vmatprep.subr.bf16.mxu0 0
    %1128 = vmatpush1.bf16.msra.mxu0 0
    %1129 = vmatprep.subr.bf16.mxu0 0
    %1130 = vmatpush1.bf16.msra.mxu0 0
    %1131 = vmatprep.subr.bf16.mxu0 0
    %1132 = vmatpush1.bf16.msra.mxu0 0
    %1133 = vmatprep.subr.bf16.mxu0 0
    %1134 = vmatpush1.bf16.msra.mxu0 0
    %1135 = vmatprep.subr.bf16.mxu0 0
    %1136 = vmatpush1.bf16.msra.mxu0 %v1119
    %1137 = vmatprep.subr.bf16.mxu0 0
    %1138 = vmatpush2.bf16.msra.mxu0 0
    %1139 = vmatprep.subr.bf16.mxu0 0
    %1140 = vmatpush2.bf16.msra.mxu0 0
    %1141 = vmatprep.subr.bf16.mxu0 0
    %1142 = vmatpush2.bf16.msra.mxu0 0
    %1143 = vmatprep.subr.bf16.mxu0 0
    %1144 = vmatpush2.bf16.msra.mxu0 0
    %1145 = vmatprep.subr.bf16.mxu0 0
    %1146 = vmatpush2.bf16.msra.mxu0 0
    %1147 = vmatprep.subr.bf16.mxu0 0
    %1148 = vmatpush2.bf16.msra.mxu0 0
    %1149 = vmatprep.subr.bf16.mxu0 0
    %1150 = vmatpush2.bf16.msra.mxu0 0
    %1151 = vmatprep.subr.bf16.mxu0 0
    %1152 = vmatpush2.bf16.msra.mxu0 0
    %1153 = vmatprep.mubr.bf16.mxu0 0
    %1154 = vmatmul.mubr.bf16.gmra.mxu0 %v1113
    %v1155 = vpop.f32.mrf.mxu0
    %v1156 = vadd.f32 0.0, %v1155
    %v1157 = vpop.f32.mrf.mxu0
    %v1158 = vpop.f32.mrf.mxu0
    %v1159 = vadd.f32 0.0, %v1158
    %v1160 = vpop.f32.mrf.mxu0
    %1161 = vmatprep.mubr.bf16.mxu0 0
    %1162 = vmatmul.mubr.bf16.gmra.mxu0 %v1116
    %v1163 = vpop.f32.mrf.mxu0
    %v1164 = vadd.f32 0.0, %v1163
    %v1165 = vpop.f32.mrf.mxu0
    %v1166 = vpop.f32.mrf.mxu0
    %v1167 = vadd.f32 0.0, %v1166
    %v1168 = vpop.f32.mrf.mxu0
    %1169 = vdwg.mxu0
    %v1170 = vunpack.c.l.bf16 %v799
    %v1171 = vunpack.c.l.bf16 %v800
    %v1172 = vunpack.c.l.bf16 %v801
    %v1173 = vunpack.c.l.bf16 %v802
    %v1174 = vmul.f32 %v1098, %v1170
    %v1175 = vmul.f32 %v1101, %v1171
    %v1176 = vmul.f32 %v1106, %v1172
    %v1177 = vmul.f32 %v1109, %v1173
    %v1178 = vmul.f32 %v1156, %v1170
    %v1179 = vmul.f32 %v1159, %v1171
    %v1180 = vmul.f32 %v1164, %v1172
    %v1181 = vmul.f32 %v1167, %v1173
    %v1182 = vadd.f32 %v1174, %v1175
    %v1183 = vadd.f32 %v1178, %v1179
    %v1184 = vadd.f32 %v1182, %v1176
    %v1185 = vadd.f32 %v1183, %v1180
    %v1186 = vadd.f32 %v1184, %v1177
    %v1187 = vadd.f32 %v1185, %v1181
    %v1188 = vpack.c.bf16 %v1186, %v1186
    %v1189 = vpack.c.bf16 %v1187, %v1187
    %v1190 = vld [vmem:[%s10] sm:$0xf]
    %v1191 = vld [vmem:[%s10 + $0x4] sm:$0xf]
    %v1192 = vld [vmem:[%s10 + $0x8] sm:$0xf]
    %v1193 = vld [vmem:[%s10 + $0xc] sm:$0xf]
    %v1194 = vld [vmem:[%s11] sm:$0x1]
    %v1196 = vlaneseq
    %v1197 = vshrl.u32 %v1196, 7
    %v1198 = vsub.s32 0, %v1197
    %v1199 = vrot.slane %v1194, %v1198
    %v1203 = vunpack.c.l.b16 %v1188
    %v1204 = vunpack.c.l.b16 %v1189
    %v1205 = vpack.c.b16 %v1204, %v1203
    %v1210 = vunpack.c.l.b16 %v1190
    %v1211 = vunpack.c.l.b16 %v1191
    %v1212 = vunpack.c.l.b16 %v1192
    %v1213 = vunpack.c.l.b16 %v1193
    %v1214 = vpack.c.b16 %v1211, %v1210
    %v1215 = vpack.c.b16 %v1213, %v1212
    %v1219 = vsel %vm144, %v1205, 0
    %1221 = vmatprep.subr.bf16.mxu0 0
    %1222 = vmatpush1.bf16.msra.mxu0 0
    %1223 = vmatprep.subr.bf16.mxu0 0
    %1224 = vmatpush1.bf16.msra.mxu0 0
    %1225 = vmatprep.subr.bf16.mxu0 0
    %1226 = vmatpush1.bf16.msra.mxu0 0
    %1227 = vmatprep.subr.bf16.mxu0 0
    %1228 = vmatpush1.bf16.msra.mxu0 0
    %1229 = vmatprep.subr.bf16.mxu0 0
    %1230 = vmatpush1.bf16.msra.mxu0 0
    %1231 = vmatprep.subr.bf16.mxu0 0
    %1232 = vmatpush1.bf16.msra.mxu0 0
    %1233 = vmatprep.subr.bf16.mxu0 0
    %1234 = vmatpush1.bf16.msra.mxu0 %v1215
    %1235 = vmatprep.subr.bf16.mxu0 0
    %1236 = vmatpush1.bf16.msra.mxu0 %v1214
    %1237 = vmatprep.subr.bf16.mxu0 0
    %1238 = vmatpush2.bf16.msra.mxu0 0
    %1239 = vmatprep.subr.bf16.mxu0 0
    %1240 = vmatpush2.bf16.msra.mxu0 0
    %1241 = vmatprep.subr.bf16.mxu0 0
    %1242 = vmatpush2.bf16.msra.mxu0 0
    %1243 = vmatprep.subr.bf16.mxu0 0
    %1244 = vmatpush2.bf16.msra.mxu0 0
    %1245 = vmatprep.subr.bf16.mxu0 0
    %1246 = vmatpush2.bf16.msra.mxu0 0
    %1247 = vmatprep.subr.bf16.mxu0 0
    %1248 = vmatpush2.bf16.msra.mxu0 0
    %1249 = vmatprep.subr.bf16.mxu0 0
    %1250 = vmatpush2.bf16.msra.mxu0 0
    %1251 = vmatprep.subr.bf16.mxu0 0
    %1252 = vmatpush2.bf16.msra.mxu0 0
    %1253 = vmatprep.mubr.bf16.mxu0 0
    %1254 = vmatmul.mubr.bf16.gmra.mxu0 %v1219
    %v1255 = vpop.f32.mrf.mxu0
    %v1256 = vadd.f32 %v1199, %v1255
    %v1257 = vpop.f32.mrf.mxu0
    %v1258 = vpop.f32.mrf.mxu0
    %v1259 = vadd.f32 %v1199, %v1258
    %v1260 = vpop.f32.mrf.mxu0
    %1261 = vdwg.mxu0
    %v1262 = vadd.f32 %v484, %v1256
    %v1263 = vadd.f32 %v547, %v1259
    %v1264 = vld [vmem:[%s12] sm:$0x1]
    %v1265 = vld [vmem:[%s13] sm:$0x1]
    %v1266 = vsel %vm144, %v1262, 0.0
    %1267 = vadd.xlane.f32.xlu0 %v1266
    %v1268 = vpop.xlane.xlu0 %1267
    %v1269 = vsel %vm144, %v1263, 0.0
    %1270 = vadd.xlane.f32.xlu0 %v1269
    %v1271 = vpop.xlane.xlu0 %1270
    %v1272 = vmul.f32 %v1268, %v560
    %v1273 = vmul.f32 %v1271, %v560
    %v1274 = vsub.f32 %v1262, %v1272
    %v1275 = vsub.f32 %v1263, %v1273
    %v1276 = vmul.f32 %v1274, %v1274
    %v1277 = vmul.f32 %v1275, %v1275
    %v1278 = vsel %vm144, %v1276, 0.0
    %1279 = vadd.xlane.f32.xlu0 %v1278
    %v1280 = vpop.xlane.xlu0 %1279
    %v1281 = vsel %vm144, %v1277, 0.0
    %1282 = vadd.xlane.f32.xlu0 %v1281
    %v1283 = vpop.xlane.xlu0 %1282
    %v1284 = vmul.f32 %v1280, %v560
    %v1285 = vmul.f32 %v1283, %v560
    %v1286 = vadd.f32 %v1284, 1e-05
    %v1287 = vadd.f32 %v1285, 1e-05
    %v1288 = vrsqrt.pop %v1286
    %v1289 = vrsqrt.pop %v1287
    %v1290 = vmul.f32 %v1274, %v1288
    %v1291 = vmul.f32 %v1275, %v1289
    %v1293 = vlaneseq
    %v1294 = vshrl.u32 %v1293, 7
    %v1295 = vsub.s32 0, %v1294
    %v1296 = vrot.slane %v1264, %v1295
    %v1298 = vmul.f32 %v1290, %v1296
    %v1299 = vmul.f32 %v1291, %v1296
    %v1301 = vlaneseq
    %v1302 = vshrl.u32 %v1301, 7
    %v1303 = vsub.s32 0, %v1302
    %v1304 = vrot.slane %v1265, %v1303
    %v1306 = vadd.f32 %v1298, %v1304
    %v1307 = vadd.f32 %v1299, %v1304
    %v1308 = vpack.c.bf16 %v1306, %v1306
    %v1309 = vpack.c.bf16 %v1307, %v1307
    %v1310 = vld [vmem:[%s14] sm:$0xf]
    %v1311 = vld [vmem:[%s14 + $0x4] sm:$0xf]
    %v1312 = vld [vmem:[%s14 + $0x8] sm:$0xf]
    %v1313 = vld [vmem:[%s14 + $0xc] sm:$0xf]
    %v1314 = vld [vmem:[%s15] sm:$0x1]
    %v1316 = vlaneseq
    %v1317 = vshrl.u32 %v1316, 7
    %v1318 = vsub.s32 0, %v1317
    %v1319 = vrot.slane %v1314, %v1318
    %v1323 = vunpack.c.l.b16 %v1308
    %v1324 = vunpack.c.l.b16 %v1309
    %v1325 = vpack.c.b16 %v1324, %v1323
    %v1330 = vunpack.c.l.b16 %v1310
    %v1331 = vunpack.c.l.b16 %v1311
    %v1332 = vunpack.c.l.b16 %v1312
    %v1333 = vunpack.c.l.b16 %v1313
    %v1334 = vpack.c.b16 %v1331, %v1330
    %v1335 = vpack.c.b16 %v1333, %v1332
    %v1339 = vsel %vm144, %v1325, 0
    %1341 = vmatprep.subr.bf16.mxu0 0
    %1342 = vmatpush1.bf16.msra.mxu0 0
    %1343 = vmatprep.subr.bf16.mxu0 0
    %1344 = vmatpush1.bf16.msra.mxu0 0
    %1345 = vmatprep.subr.bf16.mxu0 0
    %1346 = vmatpush1.bf16.msra.mxu0 0
    %1347 = vmatprep.subr.bf16.mxu0 0
    %1348 = vmatpush1.bf16.msra.mxu0 0
    %1349 = vmatprep.subr.bf16.mxu0 0
    %1350 = vmatpush1.bf16.msra.mxu0 0
    %1351 = vmatprep.subr.bf16.mxu0 0
    %1352 = vmatpush1.bf16.msra.mxu0 0
    %1353 = vmatprep.subr.bf16.mxu0 0
    %1354 = vmatpush1.bf16.msra.mxu0 %v1335
    %1355 = vmatprep.subr.bf16.mxu0 0
    %1356 = vmatpush1.bf16.msra.mxu0 %v1334
    %1357 = vmatprep.subr.bf16.mxu0 0
    %1358 = vmatpush2.bf16.msra.mxu0 0
    %1359 = vmatprep.subr.bf16.mxu0 0
    %1360 = vmatpush2.bf16.msra.mxu0 0
    %1361 = vmatprep.subr.bf16.mxu0 0
    %1362 = vmatpush2.bf16.msra.mxu0 0
    %1363 = vmatprep.subr.bf16.mxu0 0
    %1364 = vmatpush2.bf16.msra.mxu0 0
    %1365 = vmatprep.subr.bf16.mxu0 0
    %1366 = vmatpush2.bf16.msra.mxu0 0
    %1367 = vmatprep.subr.bf16.mxu0 0
    %1368 = vmatpush2.bf16.msra.mxu0 0
    %1369 = vmatprep.subr.bf16.mxu0 0
    %1370 = vmatpush2.bf16.msra.mxu0 0
    %1371 = vmatprep.subr.bf16.mxu0 0
    %1372 = vmatpush2.bf16.msra.mxu0 0
    %1373 = vmatprep.mubr.bf16.mxu0 0
    %1374 = vmatmul.mubr.bf16.gmra.mxu0 %v1339
    %v1375 = vpop.f32.mrf.mxu0
    %v1376 = vadd.f32 %v1319, %v1375
    %v1377 = vpop.f32.mrf.mxu0
    %v1378 = vpop.f32.mrf.mxu0
    %v1379 = vadd.f32 %v1319, %v1378
    %v1380 = vpop.f32.mrf.mxu0
    %1381 = vdwg.mxu0
    %v1382 = vmul.f32 %v1376, 1.702
    %v1383 = vmul.f32 %v1379, 1.702
    %v1384 = vxor.u32 %v1382, 2147483648
    %v1385 = vxor.u32 %v1383, 2147483648
    %v1386 = vmul.f32 %v1384, 1.442695
    %v1387 = vpow.pop %v1386
    %v1388 = vmul.f32 %v1385, 1.442695
    %v1389 = vpow.pop %v1388
    %v1390 = vadd.f32 %v1387, 1.0
    %v1391 = vadd.f32 %v1389, 1.0
    %v1392 = vrcp.pop %v1390
    %v1393 = vmul.f32 1.0, %v1392
    %v1394 = vrcp.pop %v1391
    %v1395 = vmul.f32 1.0, %v1394
    %v1396 = vmul.f32 %v1376, %v1393
    %v1397 = vmul.f32 %v1379, %v1395
    %v1398 = vpack.c.bf16 %v1397, %v1396
    %v1399 = vld [vmem:[%s16] sm:$0xf]
    %v1400 = vld [vmem:[%s16 + $0x4] sm:$0xf]
    %v1401 = vld [vmem:[%s16 + $0x8] sm:$0xf]
    %v1402 = vld [vmem:[%s16 + $0xc] sm:$0xf]
    %v1403 = vld [vmem:[%s16 + $0x10] sm:$0xf]
    %v1404 = vld [vmem:[%s16 + $0x14] sm:$0xf]
    %v1405 = vld [vmem:[%s16 + $0x18] sm:$0xf]
    %v1406 = vld [vmem:[%s16 + $0x1c] sm:$0xf]
    %v1407 = vld [vmem:[%s16 + $0x20] sm:$0xf]
    %v1408 = vld [vmem:[%s16 + $0x24] sm:$0xf]
    %v1409 = vld [vmem:[%s16 + $0x28] sm:$0xf]
    %v1410 = vld [vmem:[%s16 + $0x2c] sm:$0xf]
    %v1411 = vld [vmem:[%s16 + $0x30] sm:$0xf]
    %v1412 = vld [vmem:[%s16 + $0x34] sm:$0xf]
    %v1413 = vld [vmem:[%s16 + $0x38] sm:$0xf]
    %v1414 = vld [vmem:[%s16 + $0x3c] sm:$0xf]
    %v1415 = vld [vmem:[%s17] sm:$0x1]
    %v1417 = vlaneseq
    %v1418 = vshrl.u32 %v1417, 7
    %v1419 = vsub.s32 0, %v1418
    %v1420 = vrot.slane %v1415, %v1419
    %v1438 = vunpack.c.l.b16 %v1399
    %v1439 = vunpack.c.l.b16 %v1400
    %v1440 = vunpack.c.l.b16 %v1401
    %v1441 = vunpack.c.l.b16 %v1402
    %v1442 = vunpack.c.l.b16 %v1403
    %v1443 = vunpack.c.l.b16 %v1404
    %v1444 = vunpack.c.l.b16 %v1405
    %v1445 = vunpack.c.l.b16 %v1406
    %v1446 = vunpack.c.l.b16 %v1407
    %v1447 = vunpack.c.l.b16 %v1408
    %v1448 = vunpack.c.l.b16 %v1409
    %v1449 = vunpack.c.l.b16 %v1410
    %v1450 = vunpack.c.l.b16 %v1411
    %v1451 = vunpack.c.l.b16 %v1412
    %v1452 = vunpack.c.l.b16 %v1413
    %v1453 = vunpack.c.l.b16 %v1414
    %v1454 = vpack.c.b16 %v1439, %v1438
    %v1455 = vpack.c.b16 %v1441, %v1440
    %v1456 = vpack.c.b16 %v1443, %v1442
    %v1457 = vpack.c.b16 %v1445, %v1444
    %v1458 = vpack.c.b16 %v1447, %v1446
    %v1459 = vpack.c.b16 %v1449, %v1448
    %v1460 = vpack.c.b16 %v1451, %v1450
    %v1461 = vpack.c.b16 %v1453, %v1452
    %1470 = vmatprep.subr.bf16.mxu0 0
    %1471 = vmatpush1.bf16.msra.mxu0 %v1461
    %1472 = vmatprep.subr.bf16.mxu0 0
    %1473 = vmatpush1.bf16.msra.mxu0 %v1460
    %1474 = vmatprep.subr.bf16.mxu0 0
    %1475 = vmatpush1.bf16.msra.mxu0 %v1459
    %1476 = vmatprep.subr.bf16.mxu0 0
    %1477 = vmatpush1.bf16.msra.mxu0 %v1458
    %1478 = vmatprep.subr.bf16.mxu0 0
    %1479 = vmatpush1.bf16.msra.mxu0 %v1457
    %1480 = vmatprep.subr.bf16.mxu0 0
    %1481 = vmatpush1.bf16.msra.mxu0 %v1456
    %1482 = vmatprep.subr.bf16.mxu0 0
    %1483 = vmatpush1.bf16.msra.mxu0 %v1455
    %1484 = vmatprep.subr.bf16.mxu0 0
    %1485 = vmatpush1.bf16.msra.mxu0 %v1454
    %1486 = vmatprep.subr.bf16.mxu0 0
    %1487 = vmatpush2.bf16.msra.mxu0 0
    %1488 = vmatprep.subr.bf16.mxu0 0
    %1489 = vmatpush2.bf16.msra.mxu0 0
    %1490 = vmatprep.subr.bf16.mxu0 0
    %1491 = vmatpush2.bf16.msra.mxu0 0
    %1492 = vmatprep.subr.bf16.mxu0 0
    %1493 = vmatpush2.bf16.msra.mxu0 0
    %1494 = vmatprep.subr.bf16.mxu0 0
    %1495 = vmatpush2.bf16.msra.mxu0 0
    %1496 = vmatprep.subr.bf16.mxu0 0
    %1497 = vmatpush2.bf16.msra.mxu0 0
    %1498 = vmatprep.subr.bf16.mxu0 0
    %1499 = vmatpush2.bf16.msra.mxu0 0
    %1500 = vmatprep.subr.bf16.mxu0 0
    %1501 = vmatpush2.bf16.msra.mxu0 0
    %1502 = vmatprep.mubr.bf16.mxu0 0
    %1503 = vmatmul.mubr.bf16.gmra.mxu0 %v1398
    %v1504 = vpop.f32.mrf.mxu0
    %v1505 = vadd.f32 %v1420, %v1504
    %v1506 = vpop.f32.mrf.mxu0
    %v1507 = vpop.f32.mrf.mxu0
    %v1508 = vadd.f32 %v1420, %v1507
    %v1509 = vpop.f32.mrf.mxu0
    %1510 = vdwg.mxu0
    %v1511 = vadd.f32 %v1262, %v1505
    %v1512 = vadd.f32 %v1263, %v1508
    %v1513 = vpack.c.bf16 %v1511, %v1511
    %v1514 = vpack.c.bf16 %v1512, %v1512
    %v1515 = vld [vmem:[%s18] sm:$0xf]
    %v1516 = vld [vmem:[%s18 + $0x4] sm:$0xf]
    %v1517 = vld [vmem:[%s18 + $0x8] sm:$0xf]
    %v1518 = vld [vmem:[%s18 + $0xc] sm:$0xf]
    %v1523 = vunpack.c.l.b16 %v1515
    %v1524 = vunpack.c.l.b16 %v1516
    %v1525 = vunpack.c.l.b16 %v1517
    %v1526 = vunpack.c.l.b16 %v1518
    %v1527 = vpack.c.b16 %v1524, %v1523
    %v1528 = vpack.c.b16 %v1526, %v1525
    %1531 = vmatprep.subr.bf16.mxu0 0
    %1532 = vmatpush1.bf16.msra.mxu0 0
    %1533 = vmatprep.subr.bf16.mxu0 0
    %1534 = vmatpush1.bf16.msra.mxu0 0
    %1535 = vmatprep.subr.bf16.mxu0 0
    %1536 = vmatpush1.bf16.msra.mxu0 0
    %1537 = vmatprep.subr.bf16.mxu0 0
    %1538 = vmatpush1.bf16.msra.mxu0 0
    %1539 = vmatprep.subr.bf16.mxu0 0
    %1540 = vmatpush1.bf16.msra.mxu0 0
    %1541 = vmatprep.subr.bf16.mxu0 0
    %1542 = vmatpush1.bf16.msra.mxu0 0
    %1543 = vmatprep.subr.bf16.mxu0 0
    %1544 = vmatpush1.bf16.msra.mxu0 %v1528
    %1545 = vmatprep.subr.bf16.mxu0 0
    %1546 = vmatpush1.bf16.msra.mxu0 %v1527
    %1547 = vmatprep.subr.bf16.mxu0 0
    %1548 = vmatpush2.bf16.msra.mxu0 0
    %1549 = vmatprep.subr.bf16.mxu0 0
    %1550 = vmatpush2.bf16.msra.mxu0 0
    %1551 = vmatprep.subr.bf16.mxu0 0
    %1552 = vmatpush2.bf16.msra.mxu0 0
    %1553 = vmatprep.subr.bf16.mxu0 0
    %1554 = vmatpush2.bf16.msra.mxu0 0
    %1555 = vmatprep.subr.bf16.mxu0 0
    %1556 = vmatpush2.bf16.msra.mxu0 0
    %1557 = vmatprep.subr.bf16.mxu0 0
    %1558 = vmatpush2.bf16.msra.mxu0 0
    %1559 = vmatprep.subr.bf16.mxu0 0
    %1560 = vmatpush2.bf16.msra.mxu0 0
    %1561 = vmatprep.subr.bf16.mxu0 0
    %1562 = vmatpush2.bf16.msra.mxu0 0
    %1563 = vmatprep.mubr.bf16.mxu0 0
    %1564 = vmatmul.mubr.bf16.gmra.mxu0 %v146
    %v1565 = vpop.f32.mrf.mxu0
    %v1566 = vadd.f32 0.0, %v1565
    %v1567 = vpop.f32.mrf.mxu0
    %v1568 = vpop.f32.mrf.mxu0
    %v1569 = vadd.f32 0.0, %v1568
    %v1570 = vpop.f32.mrf.mxu0
    %1571 = vmatprep.mubr.bf16.mxu0 0
    %1572 = vmatmul.mubr.bf16.gmra.mxu0 %v149
    %v1573 = vpop.f32.mrf.mxu0
    %v1574 = vadd.f32 0.0, %v1573
    %v1575 = vpop.f32.mrf.mxu0
    %v1576 = vpop.f32.mrf.mxu0
    %v1577 = vadd.f32 0.0, %v1576
    %v1578 = vpop.f32.mrf.mxu0
    %1579 = vmatprep.mubr.bf16.mxu0 0
    %1580 = vmatmul.mubr.bf16.gmra.mxu0 %v152
    %v1581 = vpop.f32.mrf.mxu0
    %v1582 = vadd.f32 0.0, %v1581
    %v1583 = vpop.f32.mrf.mxu0
    %v1584 = vpop.f32.mrf.mxu0
    %v1585 = vadd.f32 0.0, %v1584
    %v1586 = vpop.f32.mrf.mxu0
    %1587 = vmatprep.mubr.bf16.mxu0 0
    %1588 = vmatmul.mubr.bf16.gmra.mxu0 %v155
    %v1589 = vpop.f32.mrf.mxu0
    %v1590 = vadd.f32 0.0, %v1589
    %v1591 = vpop.f32.mrf.mxu0
    %v1592 = vpop.f32.mrf.mxu0
    %v1593 = vadd.f32 0.0, %v1592
    %v1594 = vpop.f32.mrf.mxu0
    %1595 = vmatprep.mubr.bf16.mxu0 0
    %1596 = vmatmul.mubr.bf16.gmra.mxu0 %v158
    %v1597 = vpop.f32.mrf.mxu0
    %v1598 = vadd.f32 0.0, %v1597
    %v1599 = vpop.f32.mrf.mxu0
    %v1600 = vpop.f32.mrf.mxu0
    %v1601 = vadd.f32 0.0, %v1600
    %v1602 = vpop.f32.mrf.mxu0
    %1603 = vmatprep.mubr.bf16.mxu0 0
    %1604 = vmatmul.mubr.bf16.gmra.mxu0 %v161
    %v1605 = vpop.f32.mrf.mxu0
    %v1606 = vadd.f32 0.0, %v1605
    %v1607 = vpop.f32.mrf.mxu0
    %v1608 = vpop.f32.mrf.mxu0
    %v1609 = vadd.f32 0.0, %v1608
    %v1610 = vpop.f32.mrf.mxu0
    %1611 = vmatprep.mubr.bf16.mxu0 0
    %1612 = vmatmul.mubr.bf16.gmra.mxu0 %v164
    %v1613 = vpop.f32.mrf.mxu0
    %v1614 = vadd.f32 0.0, %v1613
    %v1615 = vpop.f32.mrf.mxu0
    %v1616 = vpop.f32.mrf.mxu0
    %v1617 = vadd.f32 0.0, %v1616
    %v1618 = vpop.f32.mrf.mxu0
    %1619 = vmatprep.mubr.bf16.mxu0 0
    %1620 = vmatmul.mubr.bf16.gmra.mxu0 %v167
    %v1621 = vpop.f32.mrf.mxu0
    %v1622 = vadd.f32 0.0, %v1621
    %v1623 = vpop.f32.mrf.mxu0
    %v1624 = vpop.f32.mrf.mxu0
    %v1625 = vadd.f32 0.0, %v1624
    %v1626 = vpop.f32.mrf.mxu0
    %1627 = vdwg.mxu0
    %v1628 = vld [vmem:[%s19] sm:$0xf]
    %v1629 = vld [vmem:[%s19 + $0x4] sm:$0xf]
    %v1630 = vld [vmem:[%s19 + $0x8] sm:$0xf]
    %v1631 = vld [vmem:[%s19 + $0xc] sm:$0xf]
    %v1634 = vunpack.c.l.b16 %v1513
    %v1635 = vunpack.c.l.b16 %v1514
    %v1636 = vpack.c.b16 %v1635, %v1634
    %v1641 = vunpack.c.l.b16 %v1628
    %v1642 = vunpack.c.l.b16 %v1629
    %v1643 = vunpack.c.l.b16 %v1630
    %v1644 = vunpack.c.l.b16 %v1631
    %v1645 = vpack.c.b16 %v1642, %v1641
    %v1646 = vpack.c.b16 %v1644, %v1643
    %v1650 = vsel %vm144, %v1636, 0
    %1652 = vmatprep.subr.bf16.mxu0 0
    %1653 = vmatpush1.bf16.msra.mxu0 0
    %1654 = vmatprep.subr.bf16.mxu0 0
    %1655 = vmatpush1.bf16.msra.mxu0 0
    %1656 = vmatprep.subr.bf16.mxu0 0
    %1657 = vmatpush1.bf16.msra.mxu0 0
    %1658 = vmatprep.subr.bf16.mxu0 0
    %1659 = vmatpush1.bf16.msra.mxu0 0
    %1660 = vmatprep.subr.bf16.mxu0 0
    %1661 = vmatpush1.bf16.msra.mxu0 0
    %1662 = vmatprep.subr.bf16.mxu0 0
    %1663 = vmatpush1.bf16.msra.mxu0 0
    %1664 = vmatprep.subr.bf16.mxu0 0
    %1665 = vmatpush1.bf16.msra.mxu0 %v1646
    %1666 = vmatprep.subr.bf16.mxu0 0
    %1667 = vmatpush1.bf16.msra.mxu0 %v1645
    %1668 = vmatprep.subr.bf16.mxu0 0
    %1669 = vmatpush2.bf16.msra.mxu0 0
    %1670 = vmatprep.subr.bf16.mxu0 0
    %1671 = vmatpush2.bf16.msra.mxu0 0
    %1672 = vmatprep.subr.bf16.mxu0 0
    %1673 = vmatpush2.bf16.msra.mxu0 0
    %1674 = vmatprep.subr.bf16.mxu0 0
    %1675 = vmatpush2.bf16.msra.mxu0 0
    %1676 = vmatprep.subr.bf16.mxu0 0
    %1677 = vmatpush2.bf16.msra.mxu0 0
    %1678 = vmatprep.subr.bf16.mxu0 0
    %1679 = vmatpush2.bf16.msra.mxu0 0
    %1680 = vmatprep.subr.bf16.mxu0 0
    %1681 = vmatpush2.bf16.msra.mxu0 0
    %1682 = vmatprep.subr.bf16.mxu0 0
    %1683 = vmatpush2.bf16.msra.mxu0 0
    %1684 = vmatprep.mubr.bf16.mxu0 0
    %1685 = vmatmul.mubr.bf16.gmra.mxu0 %v1650
    %v1686 = vpop.f32.mrf.mxu0
    %v1687 = vadd.f32 0.0, %v1686
    %v1688 = vpop.f32.mrf.mxu0
    %v1689 = vpop.f32.mrf.mxu0
    %v1690 = vadd.f32 0.0, %v1689
    %v1691 = vpop.f32.mrf.mxu0
    %1692 = vdwg.mxu0
    %v1693 = vpack.c.bf16 %v1569, %v1566
    %v1694 = vpack.c.bf16 %v1577, %v1574
    %v1695 = vpack.c.bf16 %v1585, %v1582
    %v1696 = vpack.c.bf16 %v1593, %v1590
    %v1697 = vpack.c.bf16 %v1601, %v1598
    %v1698 = vpack.c.bf16 %v1609, %v1606
    %v1699 = vpack.c.bf16 %v1617, %v1614
    %v1700 = vpack.c.bf16 %v1625, %v1622
    %v1701 = vpack.c.bf16 %v1687, %v1687
    %v1702 = vpack.c.bf16 %v1690, %v1690
    %v1704 = vsel %vm144, %v1693, 0
    %v1707 = vsel %vm144, %v1694, 0
    %v1710 = vsel %vm144, %v1695, 0
    %v1713 = vsel %vm144, %v1696, 0
    %v1716 = vsel %vm144, %v1701, 0
    %1718 = vmatprep.subr.bf16.mxu0 0
    %1719 = vmatpush1.bf16.xpose.msra.mxu0 0
    %1720 = vmatprep.subr.bf16.mxu0 0
    %1721 = vmatpush1.bf16.xpose.msra.mxu0 0
    %1722 = vmatprep.subr.bf16.mxu0 0
    %1723 = vmatpush1.bf16.xpose.msra.mxu0 0
    %1724 = vmatprep.subr.bf16.mxu0 0
    %1725 = vmatpush1.bf16.xpose.msra.mxu0 0
    %1726 = vmatprep.subr.bf16.mxu0 0
    %1727 = vmatpush1.bf16.xpose.msra.mxu0 0
    %1728 = vmatprep.subr.bf16.mxu0 0
    %1729 = vmatpush1.bf16.xpose.msra.mxu0 0
    %1730 = vmatprep.subr.bf16.mxu0 0
    %1731 = vmatpush1.bf16.xpose.msra.mxu0 0
    %1732 = vmatprep.subr.bf16.mxu0 0
    %1733 = vmatpush1.bf16.xpose.msra.mxu0 %v1716
    %1734 = vmatprep.subr.bf16.mxu0 0
    %1735 = vmatpush2.bf16.xpose.msra.mxu0 0
    %1736 = vmatprep.subr.bf16.mxu0 0
    %1737 = vmatpush2.bf16.xpose.msra.mxu0 0
    %1738 = vmatprep.subr.bf16.mxu0 0
    %1739 = vmatpush2.bf16.xpose.msra.mxu0 0
    %1740 = vmatprep.subr.bf16.mxu0 0
    %1741 = vmatpush2.bf16.xpose.msra.mxu0 0
    %1742 = vmatprep.subr.bf16.mxu0 0
    %1743 = vmatpush2.bf16.xpose.msra.mxu0 0
    %1744 = vmatprep.subr.bf16.mxu0 0
    %1745 = vmatpush2.bf16.xpose.msra.mxu0 0
    %1746 = vmatprep.subr.bf16.mxu0 0
    %1747 = vmatpush2.bf16.xpose.msra.mxu0 0
    %1748 = vmatprep.subr.bf16.mxu0 0
    %1749 = vmatpush2.bf16.xpose.msra.mxu0 0
    %1750 = vmatprep.mubr.bf16.mxu0 0
    %1751 = vmatmul.mubr.bf16.gmra.mxu0 %v1704
    %v1752 = vpop.f32.mrf.mxu0
    %v1753 = vadd.f32 0.0, %v1752
    %v1754 = vpop.f32.mrf.mxu0
    %v1755 = vpop.f32.mrf.mxu0
    %v1756 = vadd.f32 0.0, %v1755
    %v1757 = vpop.f32.mrf.mxu0
    %1758 = vmatprep.mubr.bf16.mxu0 0
    %1759 = vmatmul.mubr.bf16.gmra.mxu0 %v1707
    %v1760 = vpop.f32.mrf.mxu0
    %v1761 = vadd.f32 0.0, %v1760
    %v1762 = vpop.f32.mrf.mxu0
    %v1763 = vpop.f32.mrf.mxu0
    %v1764 = vadd.f32 0.0, %v1763
    %v1765 = vpop.f32.mrf.mxu0
    %1766 = vmatprep.mubr.bf16.mxu0 0
    %1767 = vmatmul.mubr.bf16.gmra.mxu0 %v1710
    %v1768 = vpop.f32.mrf.mxu0
    %v1769 = vadd.f32 0.0, %v1768
    %v1770 = vpop.f32.mrf.mxu0
    %v1771 = vpop.f32.mrf.mxu0
    %v1772 = vadd.f32 0.0, %v1771
    %v1773 = vpop.f32.mrf.mxu0
    %1774 = vmatprep.mubr.bf16.mxu0 0
    %1775 = vmatmul.mubr.bf16.gmra.mxu0 %v1713
    %v1776 = vpop.f32.mrf.mxu0
    %v1777 = vadd.f32 0.0, %v1776
    %v1778 = vpop.f32.mrf.mxu0
    %v1779 = vpop.f32.mrf.mxu0
    %v1780 = vadd.f32 0.0, %v1779
    %v1781 = vpop.f32.mrf.mxu0
    %1782 = vdwg.mxu0
    %v1784 = vsel %vm144, %v1697, 0
    %v1787 = vsel %vm144, %v1698, 0
    %v1790 = vsel %vm144, %v1699, 0
    %v1793 = vsel %vm144, %v1700, 0
    %v1796 = vsel %vm144, %v1702, 0
    %1798 = vmatprep.subr.bf16.mxu0 0
    %1799 = vmatpush1.bf16.xpose.msra.mxu0 0
    %1800 = vmatprep.subr.bf16.mxu0 0
    %1801 = vmatpush1.bf16.xpose.msra.mxu0 0
    %1802 = vmatprep.subr.bf16.mxu0 0
    %1803 = vmatpush1.bf16.xpose.msra.mxu0 0
    %1804 = vmatprep.subr.bf16.mxu0 0
    %1805 = vmatpush1.bf16.xpose.msra.mxu0 0
    %1806 = vmatprep.subr.bf16.mxu0 0
    %1807 = vmatpush1.bf16.xpose.msra.mxu0 0
    %1808 = vmatprep.subr.bf16.mxu0 0
    %1809 = vmatpush1.bf16.xpose.msra.mxu0 0
    %1810 = vmatprep.subr.bf16.mxu0 0
    %1811 = vmatpush1.bf16.xpose.msra.mxu0 0
    %1812 = vmatprep.subr.bf16.mxu0 0
    %1813 = vmatpush1.bf16.xpose.msra.mxu0 %v1796
    %1814 = vmatprep.subr.bf16.mxu0 0
    %1815 = vmatpush2.bf16.xpose.msra.mxu0 0
    %1816 = vmatprep.subr.bf16.mxu0 0
    %1817 = vmatpush2.bf16.xpose.msra.mxu0 0
    %1818 = vmatprep.subr.bf16.mxu0 0
    %1819 = vmatpush2.bf16.xpose.msra.mxu0 0
    %1820 = vmatprep.subr.bf16.mxu0 0
    %1821 = vmatpush2.bf16.xpose.msra.mxu0 0
    %1822 = vmatprep.subr.bf16.mxu0 0
    %1823 = vmatpush2.bf16.xpose.msra.mxu0 0
    %1824 = vmatprep.subr.bf16.mxu0 0
    %1825 = vmatpush2.bf16.xpose.msra.mxu0 0
    %1826 = vmatprep.subr.bf16.mxu0 0
    %1827 = vmatpush2.bf16.xpose.msra.mxu0 0
    %1828 = vmatprep.subr.bf16.mxu0 0
    %1829 = vmatpush2.bf16.xpose.msra.mxu0 0
    %1830 = vmatprep.mubr.bf16.mxu0 0
    %1831 = vmatmul.mubr.bf16.gmra.mxu0 %v1784
    %v1832 = vpop.f32.mrf.mxu0
    %v1833 = vadd.f32 0.0, %v1832
    %v1834 = vpop.f32.mrf.mxu0
    %v1835 = vpop.f32.mrf.mxu0
    %v1836 = vadd.f32 0.0, %v1835
    %v1837 = vpop.f32.mrf.mxu0
    %1838 = vmatprep.mubr.bf16.mxu0 0
    %1839 = vmatmul.mubr.bf16.gmra.mxu0 %v1787
    %v1840 = vpop.f32.mrf.mxu0
    %v1841 = vadd.f32 0.0, %v1840
    %v1842 = vpop.f32.mrf.mxu0
    %v1843 = vpop.f32.mrf.mxu0
    %v1844 = vadd.f32 0.0, %v1843
    %v1845 = vpop.f32.mrf.mxu0
    %1846 = vmatprep.mubr.bf16.mxu0 0
    %1847 = vmatmul.mubr.bf16.gmra.mxu0 %v1790
    %v1848 = vpop.f32.mrf.mxu0
    %v1849 = vadd.f32 0.0, %v1848
    %v1850 = vpop.f32.mrf.mxu0
    %v1851 = vpop.f32.mrf.mxu0
    %v1852 = vadd.f32 0.0, %v1851
    %v1853 = vpop.f32.mrf.mxu0
    %1854 = vmatprep.mubr.bf16.mxu0 0
    %1855 = vmatmul.mubr.bf16.gmra.mxu0 %v1793
    %v1856 = vpop.f32.mrf.mxu0
    %v1857 = vadd.f32 0.0, %v1856
    %v1858 = vpop.f32.mrf.mxu0
    %v1859 = vpop.f32.mrf.mxu0
    %v1860 = vadd.f32 0.0, %v1859
    %v1861 = vpop.f32.mrf.mxu0
    %1862 = vdwg.mxu0
    %v1863 = vsel %vm266, %v1753, -inf
    %1864 = vmax.xlane.f32.xlu0 %v1863
    %v1865 = vpop.xlane.xlu0 %1864
    %v1866 = vsel %vm266, %v1756, -inf
    %1867 = vmax.xlane.f32.xlu0 %v1866
    %v1868 = vpop.xlane.xlu0 %1867
    %v1869 = vsel %vm266, %v1761, -inf
    %1870 = vmax.xlane.f32.xlu0 %v1869
    %v1871 = vpop.xlane.xlu0 %1870
    %v1872 = vsel %vm266, %v1764, -inf
    %1873 = vmax.xlane.f32.xlu0 %v1872
    %v1874 = vpop.xlane.xlu0 %1873
    %v1875 = vsel %vm266, %v1769, -inf
    %1876 = vmax.xlane.f32.xlu0 %v1875
    %v1877 = vpop.xlane.xlu0 %1876
    %v1878 = vsel %vm266, %v1772, -inf
    %1879 = vmax.xlane.f32.xlu0 %v1878
    %v1880 = vpop.xlane.xlu0 %1879
    %v1881 = vsel %vm266, %v1777, -inf
    %1882 = vmax.xlane.f32.xlu0 %v1881
    %v1883 = vpop.xlane.xlu0 %1882
    %v1884 = vsel %vm266, %v1780, -inf
    %1885 = vmax.xlane.f32.xlu0 %v1884
    %v1886 = vpop.xlane.xlu0 %1885
    %v1887 = vsel %vm266, %v1833, -inf
    %1888 = vmax.xlane.f32.xlu0 %v1887
    %v1889 = vpop.xlane.xlu0 %1888
    %v1890 = vsel %vm266, %v1836, -inf
    %1891 = vmax.xlane.f32.xlu0 %v1890
    %v1892 = vpop.xlane.xlu0 %1891
    %v1893 = vsel %vm266, %v1841, -inf
    %1894 = vmax.xlane.f32.xlu0 %v1893
    %v1895 = vpop.xlane.xlu0 %1894
    %v1896 = vsel %vm266, %v1844, -inf
    %1897 = vmax.xlane.f32.xlu0 %v1896
    %v1898 = vpop.xlane.xlu0 %1897
    %v1899 = vsel %vm266, %v1849, -inf
    %1900 = vmax.xlane.f32.xlu0 %v1899
    %v1901 = vpop.xlane.xlu0 %1900
    %v1902 = vsel %vm266, %v1852, -inf
    %1903 = vmax.xlane.f32.xlu0 %v1902
    %v1904 = vpop.xlane.xlu0 %1903
    %v1905 = vsel %vm266, %v1857, -inf
    %1906 = vmax.xlane.f32.xlu0 %v1905
    %v1907 = vpop.xlane.xlu0 %1906
    %v1908 = vsel %vm266, %v1860, -inf
    %1909 = vmax.xlane.f32.xlu0 %v1908
    %v1910 = vpop.xlane.xlu0 %1909
    %v1911 = vsub.f32 %v1753, %v1865
    %v1912 = vsub.f32 %v1756, %v1868
    %v1913 = vsub.f32 %v1761, %v1871
    %v1914 = vsub.f32 %v1764, %v1874
    %v1915 = vsub.f32 %v1769, %v1877
    %v1916 = vsub.f32 %v1772, %v1880
    %v1917 = vsub.f32 %v1777, %v1883
    %v1918 = vsub.f32 %v1780, %v1886
    %v1919 = vsub.f32 %v1833, %v1889
    %v1920 = vsub.f32 %v1836, %v1892
    %v1921 = vsub.f32 %v1841, %v1895
    %v1922 = vsub.f32 %v1844, %v1898
    %v1923 = vsub.f32 %v1849, %v1901
    %v1924 = vsub.f32 %v1852, %v1904
    %v1925 = vsub.f32 %v1857, %v1907
    %v1926 = vsub.f32 %v1860, %v1910
    %v1927 = vmul.f32 %v1911, 1.442695
    %v1928 = vpow.pop %v1927
    %v1929 = vmul.f32 %v1912, 1.442695
    %v1930 = vpow.pop %v1929
    %v1931 = vmul.f32 %v1913, 1.442695
    %v1932 = vpow.pop %v1931
    %v1933 = vmul.f32 %v1914, 1.442695
    %v1934 = vpow.pop %v1933
    %v1935 = vmul.f32 %v1915, 1.442695
    %v1936 = vpow.pop %v1935
    %v1937 = vmul.f32 %v1916, 1.442695
    %v1938 = vpow.pop %v1937
    %v1939 = vmul.f32 %v1917, 1.442695
    %v1940 = vpow.pop %v1939
    %v1941 = vmul.f32 %v1918, 1.442695
    %v1942 = vpow.pop %v1941
    %v1943 = vmul.f32 %v1919, 1.442695
    %v1944 = vpow.pop %v1943
    %v1945 = vmul.f32 %v1920, 1.442695
    %v1946 = vpow.pop %v1945
    %v1947 = vmul.f32 %v1921, 1.442695
    %v1948 = vpow.pop %v1947
    %v1949 = vmul.f32 %v1922, 1.442695
    %v1950 = vpow.pop %v1949
    %v1951 = vmul.f32 %v1923, 1.442695
    %v1952 = vpow.pop %v1951
    %v1953 = vmul.f32 %v1924, 1.442695
    %v1954 = vpow.pop %v1953
    %v1955 = vmul.f32 %v1925, 1.442695
    %v1956 = vpow.pop %v1955
    %v1957 = vmul.f32 %v1926, 1.442695
    %v1958 = vpow.pop %v1957
    %v1959 = vsel %vm266, %v1928, 0.0
    %1960 = vadd.xlane.f32.xlu0 %v1959
    %v1961 = vpop.xlane.xlu0 %1960
    %v1962 = vsel %vm266, %v1930, 0.0
    %1963 = vadd.xlane.f32.xlu0 %v1962
    %v1964 = vpop.xlane.xlu0 %1963
    %v1965 = vsel %vm266, %v1932, 0.0
    %1966 = vadd.xlane.f32.xlu0 %v1965
    %v1967 = vpop.xlane.xlu0 %1966
    %v1968 = vsel %vm266, %v1934, 0.0
    %1969 = vadd.xlane.f32.xlu0 %v1968
    %v1970 = vpop.xlane.xlu0 %1969
    %v1971 = vsel %vm266, %v1936, 0.0
    %1972 = vadd.xlane.f32.xlu0 %v1971
    %v1973 = vpop.xlane.xlu0 %1972
    %v1974 = vsel %vm266, %v1938, 0.0
    %1975 = vadd.xlane.f32.xlu0 %v1974
    %v1976 = vpop.xlane.xlu0 %1975
    %v1977 = vsel %vm266, %v1940, 0.0
    %1978 = vadd.xlane.f32.xlu0 %v1977
    %v1979 = vpop.xlane.xlu0 %1978
    %v1980 = vsel %vm266, %v1942, 0.0
    %1981 = vadd.xlane.f32.xlu0 %v1980
    %v1982 = vpop.xlane.xlu0 %1981
    %v1983 = vsel %vm266, %v1944, 0.0
    %1984 = vadd.xlane.f32.xlu0 %v1983
    %v1985 = vpop.xlane.xlu0 %1984
    %v1986 = vsel %vm266, %v1946, 0.0
    %1987 = vadd.xlane.f32.xlu0 %v1986
    %v1988 = vpop.xlane.xlu0 %1987
    %v1989 = vsel %vm266, %v1948, 0.0
    %1990 = vadd.xlane.f32.xlu0 %v1989
    %v1991 = vpop.xlane.xlu0 %1990
    %v1992 = vsel %vm266, %v1950, 0.0
    %1993 = vadd.xlane.f32.xlu0 %v1992
    %v1994 = vpop.xlane.xlu0 %1993
    %v1995 = vsel %vm266, %v1952, 0.0
    %1996 = vadd.xlane.f32.xlu0 %v1995
    %v1997 = vpop.xlane.xlu0 %1996
    %v1998 = vsel %vm266, %v1954, 0.0
    %1999 = vadd.xlane.f32.xlu0 %v1998
    %v2000 = vpop.xlane.xlu0 %1999
    %v2001 = vsel %vm266, %v1956, 0.0
    %2002 = vadd.xlane.f32.xlu0 %v2001
    %v2003 = vpop.xlane.xlu0 %2002
    %v2004 = vsel %vm266, %v1958, 0.0
    %2005 = vadd.xlane.f32.xlu0 %v2004
    %v2006 = vpop.xlane.xlu0 %2005
    %v2007 = vrcp.pop %v1961
    %v2008 = vrcp.pop %v1964
    %v2009 = vrcp.pop %v1967
    %v2010 = vrcp.pop %v1970
    %v2011 = vrcp.pop %v1973
    %v2012 = vrcp.pop %v1976
    %v2013 = vrcp.pop %v1979
    %v2014 = vrcp.pop %v1982
    %v2015 = vrcp.pop %v1985
    %v2016 = vrcp.pop %v1988
    %v2017 = vrcp.pop %v1991
    %v2018 = vrcp.pop %v1994
    %v2019 = vrcp.pop %v1997
    %v2020 = vrcp.pop %v2000
    %v2021 = vrcp.pop %v2003
    %v2022 = vrcp.pop %v2006
    %v2023 = vmul.f32 %v1928, %v2007
    %v2024 = vmul.f32 %v1930, %v2008
    %v2025 = vmul.f32 %v1932, %v2009
    %v2026 = vmul.f32 %v1934, %v2010
    %v2027 = vmul.f32 %v1936, %v2011
    %v2028 = vmul.f32 %v1938, %v2012
    %v2029 = vmul.f32 %v1940, %v2013
    %v2030 = vmul.f32 %v1942, %v2014
    %v2031 = vmul.f32 %v1944, %v2015
    %v2032 = vmul.f32 %v1946, %v2016
    %v2033 = vmul.f32 %v1948, %v2017
    %v2034 = vmul.f32 %v1950, %v2018
    %v2035 = vmul.f32 %v1952, %v2019
    %v2036 = vmul.f32 %v1954, %v2020
    %v2037 = vmul.f32 %v1956, %v2021
    %v2038 = vmul.f32 %v1958, %v2022
    %v2039 = vunpack.c.l.bf16 %v72
    %v2040 = vunpack.c.l.bf16 %v73
    %v2041 = vunpack.c.l.bf16 %v74
    %v2042 = vunpack.c.l.bf16 %v75
    %v2043 = vunpack.c.l.bf16 %v76
    %v2044 = vunpack.c.l.bf16 %v77
    %v2045 = vunpack.c.l.bf16 %v78
    %v2046 = vunpack.c.l.bf16 %v79
    %v2047 = vunpack.c.l.bf16 %v80
    %v2048 = vunpack.c.l.bf16 %v81
    %v2049 = vunpack.c.l.bf16 %v82
    %v2050 = vunpack.c.l.bf16 %v83
    %v2051 = vunpack.c.l.bf16 %v84
    %v2052 = vunpack.c.l.bf16 %v85
    %v2053 = vunpack.c.l.bf16 %v86
    %v2054 = vunpack.c.l.bf16 %v87
    %v2055 = vpack.c.bf16 %v2024, %v2023
    %v2056 = vpack.c.bf16 %v2026, %v2025
    %v2057 = vpack.c.bf16 %v2028, %v2027
    %v2058 = vpack.c.bf16 %v2030, %v2029
    %v2059 = vpack.c.bf16 %v2032, %v2031
    %v2060 = vpack.c.bf16 %v2034, %v2033
    %v2061 = vpack.c.bf16 %v2036, %v2035
    %v2062 = vpack.c.bf16 %v2038, %v2037
    %v2064 = vsel %vm266, %v2055, 0
    %v2067 = vsel %vm266, %v2056, 0
    %v2070 = vsel %vm266, %v2057, 0
    %v2073 = vsel %vm266, %v2058, 0
    %v2076 = vsel %vm1059, %v1513, 0
    %2078 = vmatprep.subr.bf16.mxu0 0
    %2079 = vmatpush1.bf16.msra.mxu0 0
    %2080 = vmatprep.subr.bf16.mxu0 0
    %2081 = vmatpush1.bf16.msra.mxu0 0
    %2082 = vmatprep.subr.bf16.mxu0 0
    %2083 = vmatpush1.bf16.msra.mxu0 0
    %2084 = vmatprep.subr.bf16.mxu0 0
    %2085 = vmatpush1.bf16.msra.mxu0 0
    %2086 = vmatprep.subr.bf16.mxu0 0
    %2087 = vmatpush1.bf16.msra.mxu0 0
    %2088 = vmatprep.subr.bf16.mxu0 0
    %2089 = vmatpush1.bf16.msra.mxu0 0
    %2090 = vmatprep.subr.bf16.mxu0 0
    %2091 = vmatpush1.bf16.msra.mxu0 0
    %2092 = vmatprep.subr.bf16.mxu0 0
    %2093 = vmatpush1.bf16.msra.mxu0 %v2076
    %2094 = vmatprep.subr.bf16.mxu0 0
    %2095 = vmatpush2.bf16.msra.mxu0 0
    %2096 = vmatprep.subr.bf16.mxu0 0
    %2097 = vmatpush2.bf16.msra.mxu0 0
    %2098 = vmatprep.subr.bf16.mxu0 0
    %2099 = vmatpush2.bf16.msra.mxu0 0
    %2100 = vmatprep.subr.bf16.mxu0 0
    %2101 = vmatpush2.bf16.msra.mxu0 0
    %2102 = vmatprep.subr.bf16.mxu0 0
    %2103 = vmatpush2.bf16.msra.mxu0 0
    %2104 = vmatprep.subr.bf16.mxu0 0
    %2105 = vmatpush2.bf16.msra.mxu0 0
    %2106 = vmatprep.subr.bf16.mxu0 0
    %2107 = vmatpush2.bf16.msra.mxu0 0
    %2108 = vmatprep.subr.bf16.mxu0 0
    %2109 = vmatpush2.bf16.msra.mxu0 0
    %2110 = vmatprep.mubr.bf16.mxu0 0
    %2111 = vmatmul.mubr.bf16.gmra.mxu0 %v2064
    %v2112 = vpop.f32.mrf.mxu0
    %v2113 = vadd.f32 0.0, %v2112
    %v2114 = vpop.f32.mrf.mxu0
    %v2115 = vpop.f32.mrf.mxu0
    %v2116 = vadd.f32 0.0, %v2115
    %v2117 = vpop.f32.mrf.mxu0
    %2118 = vmatprep.mubr.bf16.mxu0 0
    %2119 = vmatmul.mubr.bf16.gmra.mxu0 %v2067
    %v2120 = vpop.f32.mrf.mxu0
    %v2121 = vadd.f32 0.0, %v2120
    %v2122 = vpop.f32.mrf.mxu0
    %v2123 = vpop.f32.mrf.mxu0
    %v2124 = vadd.f32 0.0, %v2123
    %v2125 = vpop.f32.mrf.mxu0
    %2126 = vmatprep.mubr.bf16.mxu0 0
    %2127 = vmatmul.mubr.bf16.gmra.mxu0 %v2070
    %v2128 = vpop.f32.mrf.mxu0
    %v2129 = vadd.f32 0.0, %v2128
    %v2130 = vpop.f32.mrf.mxu0
    %v2131 = vpop.f32.mrf.mxu0
    %v2132 = vadd.f32 0.0, %v2131
    %v2133 = vpop.f32.mrf.mxu0
    %2134 = vmatprep.mubr.bf16.mxu0 0
    %2135 = vmatmul.mubr.bf16.gmra.mxu0 %v2073
    %v2136 = vpop.f32.mrf.mxu0
    %v2137 = vadd.f32 0.0, %v2136
    %v2138 = vpop.f32.mrf.mxu0
    %v2139 = vpop.f32.mrf.mxu0
    %v2140 = vadd.f32 0.0, %v2139
    %v2141 = vpop.f32.mrf.mxu0
    %2142 = vdwg.mxu0
    %v2144 = vsel %vm266, %v2059, 0
    %v2147 = vsel %vm266, %v2060, 0
    %v2150 = vsel %vm266, %v2061, 0
    %v2153 = vsel %vm266, %v2062, 0
    %v2156 = vsel %vm1059, %v1514, 0
    %2158 = vmatprep.subr.bf16.mxu0 0
    %2159 = vmatpush1.bf16.msra.mxu0 0
    %2160 = vmatprep.subr.bf16.mxu0 0
    %2161 = vmatpush1.bf16.msra.mxu0 0
    %2162 = vmatprep.subr.bf16.mxu0 0
    %2163 = vmatpush1.bf16.msra.mxu0 0
    %2164 = vmatprep.subr.bf16.mxu0 0
    %2165 = vmatpush1.bf16.msra.mxu0 0
    %2166 = vmatprep.subr.bf16.mxu0 0
    %2167 = vmatpush1.bf16.msra.mxu0 0
    %2168 = vmatprep.subr.bf16.mxu0 0
    %2169 = vmatpush1.bf16.msra.mxu0 0
    %2170 = vmatprep.subr.bf16.mxu0 0
    %2171 = vmatpush1.bf16.msra.mxu0 0
    %2172 = vmatprep.subr.bf16.mxu0 0
    %2173 = vmatpush1.bf16.msra.mxu0 %v2156
    %2174 = vmatprep.subr.bf16.mxu0 0
    %2175 = vmatpush2.bf16.msra.mxu0 0
    %2176 = vmatprep.subr.bf16.mxu0 0
    %2177 = vmatpush2.bf16.msra.mxu0 0
    %2178 = vmatprep.subr.bf16.mxu0 0
    %2179 = vmatpush2.bf16.msra.mxu0 0
    %2180 = vmatprep.subr.bf16.mxu0 0
    %2181 = vmatpush2.bf16.msra.mxu0 0
    %2182 = vmatprep.subr.bf16.mxu0 0
    %2183 = vmatpush2.bf16.msra.mxu0 0
    %2184 = vmatprep.subr.bf16.mxu0 0
    %2185 = vmatpush2.bf16.msra.mxu0 0
    %2186 = vmatprep.subr.bf16.mxu0 0
    %2187 = vmatpush2.bf16.msra.mxu0 0
    %2188 = vmatprep.subr.bf16.mxu0 0
    %2189 = vmatpush2.bf16.msra.mxu0 0
    %2190 = vmatprep.mubr.bf16.mxu0 0
    %2191 = vmatmul.mubr.bf16.gmra.mxu0 %v2144
    %v2192 = vpop.f32.mrf.mxu0
    %v2193 = vadd.f32 0.0, %v2192
    %v2194 = vpop.f32.mrf.mxu0
    %v2195 = vpop.f32.mrf.mxu0
    %v2196 = vadd.f32 0.0, %v2195
    %v2197 = vpop.f32.mrf.mxu0
    %2198 = vmatprep.mubr.bf16.mxu0 0
    %2199 = vmatmul.mubr.bf16.gmra.mxu0 %v2147
    %v2200 = vpop.f32.mrf.mxu0
    %v2201 = vadd.f32 0.0, %v2200
    %v2202 = vpop.f32.mrf.mxu0
    %v2203 = vpop.f32.mrf.mxu0
    %v2204 = vadd.f32 0.0, %v2203
    %v2205 = vpop.f32.mrf.mxu0
    %2206 = vmatprep.mubr.bf16.mxu0 0
    %2207 = vmatmul.mubr.bf16.gmra.mxu0 %v2150
    %v2208 = vpop.f32.mrf.mxu0
    %v2209 = vadd.f32 0.0, %v2208
    %v2210 = vpop.f32.mrf.mxu0
    %v2211 = vpop.f32.mrf.mxu0
    %v2212 = vadd.f32 0.0, %v2211
    %v2213 = vpop.f32.mrf.mxu0
    %2214 = vmatprep.mubr.bf16.mxu0 0
    %2215 = vmatmul.mubr.bf16.gmra.mxu0 %v2153
    %v2216 = vpop.f32.mrf.mxu0
    %v2217 = vadd.f32 0.0, %v2216
    %v2218 = vpop.f32.mrf.mxu0
    %v2219 = vpop.f32.mrf.mxu0
    %v2220 = vadd.f32 0.0, %v2219
    %v2221 = vpop.f32.mrf.mxu0
    %2222 = vdwg.mxu0
    %v2223 = vadd.f32 %v2039, %v2113
    %v2224 = vadd.f32 %v2040, %v2116
    %v2225 = vadd.f32 %v2041, %v2121
    %v2226 = vadd.f32 %v2042, %v2124
    %v2227 = vadd.f32 %v2043, %v2129
    %v2228 = vadd.f32 %v2044, %v2132
    %v2229 = vadd.f32 %v2045, %v2137
    %v2230 = vadd.f32 %v2046, %v2140
    %v2231 = vadd.f32 %v2047, %v2193
    %v2232 = vadd.f32 %v2048, %v2196
    %v2233 = vadd.f32 %v2049, %v2201
    %v2234 = vadd.f32 %v2050, %v2204
    %v2235 = vadd.f32 %v2051, %v2209
    %v2236 = vadd.f32 %v2052, %v2212
    %v2237 = vadd.f32 %v2053, %v2217
    %v2238 = vadd.f32 %v2054, %v2220
    %2239 = vst.msk [vmem:[%s21] sm:$0xff] %vm144, %v2223
    %2240 = vst.msk [vmem:[%s21 + $0x8] sm:$0xff] %vm144, %v2224
    %2241 = vst.msk [vmem:[%s21 + $0x10] sm:$0xff] %vm144, %v2225
    %2242 = vst.msk [vmem:[%s21 + $0x18] sm:$0xff] %vm144, %v2226
    %2243 = vst.msk [vmem:[%s21 + $0x20] sm:$0xff] %vm144, %v2227
    %2244 = vst.msk [vmem:[%s21 + $0x28] sm:$0xff] %vm144, %v2228
    %2245 = vst.msk [vmem:[%s21 + $0x30] sm:$0xff] %vm144, %v2229
    %2246 = vst.msk [vmem:[%s21 + $0x38] sm:$0xff] %vm144, %v2230
    %2247 = vst.msk [vmem:[%s21 + $0x40] sm:$0xff] %vm144, %v2231
    %2248 = vst.msk [vmem:[%s21 + $0x48] sm:$0xff] %vm144, %v2232
    %2249 = vst.msk [vmem:[%s21 + $0x50] sm:$0xff] %vm144, %v2233
    %2250 = vst.msk [vmem:[%s21 + $0x58] sm:$0xff] %vm144, %v2234
    %2251 = vst.msk [vmem:[%s21 + $0x60] sm:$0xff] %vm144, %v2235
    %2252 = vst.msk [vmem:[%s21 + $0x68] sm:$0xff] %vm144, %v2236
    %2253 = vst.msk [vmem:[%s21 + $0x70] sm:$0xff] %vm144, %v2237
    %2254 = vst.msk [vmem:[%s21 + $0x78] sm:$0xff] %vm144, %v2238
    %2255 = vst.msk [vmem:[#allocation2] sm:$0xff] %vm144, %v1511
    %2256 = vst.msk [vmem:[#allocation2 + $0x8] sm:$0xff] %vm144, %v1512
    // Predicated region
    $region86: #{tpu_custom_call.1} parent=1 // pred_check
      _
    $region87: #{tpu_custom_call.1} parent=1 // pred_check_branch
      %2258 = sbr.rel (0) target = $region89
    $region88: #{tpu_custom_call.1} parent=1 // pred_region
      _
    $region89: #{tpu_custom_call.1} parent=1 // pred_fallthru
      _
    // Predicated region
    $region90: #{tpu_custom_call.1} parent=1 // pred_check
      _
    $region91: #{tpu_custom_call.1} parent=1 // pred_check_branch
      %2260 = sbr.rel (0) target = $region93
    $region92: #{tpu_custom_call.1} parent=1 // pred_region
      %s2262 = ssub.s32 256, 256
      %2263 = vsyncadd [#allocation3], %s2262
      %s2264 = sshll.u32 [#allocation2], 4
      %s2265 = int_to_ptr.vmem [resolvable:$true] %s2264
      %2270 = dma.vmem_to_hbm [thread:$0]  %s2265, 256, %s22, [#allocation3], 128, 128, 8
    $region93: #{tpu_custom_call.1} parent=1 // pred_fallthru
      _
    // Predicated region
    $region94: #{tpu_custom_call.1} parent=1 // pred_check
      _
    $region95: #{tpu_custom_call.1} parent=1 // pred_check_branch
      %2272 = sbr.rel (0) target = $region97
    $region96: #{tpu_custom_call.1} parent=1 // pred_region
      _
    $region97: #{tpu_custom_call.1} parent=1 // pred_fallthru
      _
    // Predicated region
    $region98: #{tpu_custom_call.1} parent=1 // pred_check
      _
    $region99: #{tpu_custom_call.1} parent=1 // pred_check_branch
      %2274 = sbr.rel (0) target = $region101
    $region100: #{tpu_custom_call.1} parent=1 // pred_region
      %2275 = dma.done [#allocation3], 256
    $region101: #{tpu_custom_call.1} parent=1 // pred_fallthru
      _
    %2276 = vsyncpa [#allocation3], 1

</llo_original>
